<compile_context>
chip_gen: v7x
topology: tpu7x:2x2x1
jax: 0.10.0
libtpu: 0.0.40
codegen_flags: <defaults>
</compile_context>

<pallas_src>
import functools

import jax
import jax.numpy as jnp
from jax.experimental import pallas as pl
from jax.experimental.pallas import tpu as pltpu


def _detect_vmem_limit_bytes():
    """Generation-aware scoped-VMEM limit: ~3/4 of physical (96 MiB on v5e/v6e,
    48 MiB on v7x); safe fallback if the query is unavailable."""
    try:
        cap = int(pltpu.get_tpu_info().vmem_capacity_bytes)
    except Exception:
        cap = 64 * 1024 * 1024
    return max(32 * 1024 * 1024, min((cap * 3) // 4, 96 * 1024 * 1024))


VMEM_LIMIT_BYTES = _detect_vmem_limit_bytes()

# Tile preferences.
TM_PREF = 512    # GEMM activation-row tile
TN_PREF = 512    # GEMM output-feature tile
TK_PREF = 512    # GEMM contraction tile
LN_TM_PREF = 128  # row tile of the fused matmul+LN epilogue (full-N blocks; v7x-safe)
TQ_PREF = 256    # SDPA query tile   (fills 256x256 MXU on v6e/v7x; v5e may prefer 128)
TKV_PREF = 256   # SDPA key/value tile
BH_PREF = 4      # (batch*head) slices batched per SDPA grid step


def _tile(dim, pref, align):
    """Largest block size <= pref that is a multiple of `align` and divides `dim`.

    Falls back to the full dimension (always a legal block shape) only if no such
    divisor exists, so non-divisible shapes never silently lose pipelining by
    accident on axes where a legal smaller tile exists.
    """
    if dim <= pref:
        return dim
    t = (min(pref, dim) // align) * align
    while t >= align:
        if dim % t == 0:
            return t
        t -= align
    return dim


# ------------------------- kernels -------------------------

def _matmul_bias_kernel(x_ref, w_ref, b_ref, o_ref, acc_ref):
    """Tiled y = x @ w + b.  grid = (M//tm, N//tn, K//tk); k is the reduction axis."""
    k = pl.program_id(2)

    @pl.when(k == 0)
    def _init():
        acc_ref[...] = jnp.zeros(acc_ref.shape, jnp.float32)

    acc_ref[...] += jnp.dot(x_ref[...], w_ref[...],
                            preferred_element_type=jnp.float32)

    @pl.when(k == pl.num_programs(2) - 1)
    def _finalize():
        o_ref[...] = (acc_ref[...] + b_ref[...].astype(jnp.float32)).astype(o_ref.dtype)


def _qkv_fused_kernel(x_ref, wv_ref, wq_ref, wk_ref, bv_ref, bq_ref, bk_ref,
                      v_ref, q_ref, k_ref, accv_ref, accq_ref, acck_ref):
    """Fused self-attention projections: one x tile drives three matmuls and three
    separate outputs (V, Q, K) -- no weight concat, no output column slicing."""
    kk = pl.program_id(2)

    @pl.when(kk == 0)
    def _init():
        accv_ref[...] = jnp.zeros(accv_ref.shape, jnp.float32)
        accq_ref[...] = jnp.zeros(accq_ref.shape, jnp.float32)
        acck_ref[...] = jnp.zeros(acck_ref.shape, jnp.float32)

    x = x_ref[...]
    accv_ref[...] += jnp.dot(x, wv_ref[...], preferred_element_type=jnp.float32)
    accq_ref[...] += jnp.dot(x, wq_ref[...], preferred_element_type=jnp.float32)
    acck_ref[...] += jnp.dot(x, wk_ref[...], preferred_element_type=jnp.float32)

    @pl.when(kk == pl.num_programs(2) - 1)
    def _finalize():
        v_ref[...] = (accv_ref[...] + bv_ref[...].astype(jnp.float32)).astype(v_ref.dtype)
        q_ref[...] = (accq_ref[...] + bq_ref[...].astype(jnp.float32)).astype(q_ref.dtype)
        k_ref[...] = (acck_ref[...] + bk_ref[...].astype(jnp.float32)).astype(k_ref.dtype)


def _matmul_bias_residual_ln_kernel(x_ref, w_ref, b_ref, r_ref, g_ref, bb_ref,
                                    o_ref, acc_ref, *, eps):
    """Tiled y = LayerNorm(x @ w + b + residual).  grid = (M//tm, K//tk).

    The N axis is one full block so LayerNorm sees the whole feature row in the
    epilogue (all reductions/normalization in f32).  tm is kept small (128) so the
    full-N f32 accumulator + buffers stay within v7x's 64 MiB VMEM at large D.
    """
    k = pl.program_id(1)

    @pl.when(k == 0)
    def _init():
        acc_ref[...] = jnp.zeros(acc_ref.shape, jnp.float32)

    acc_ref[...] += jnp.dot(x_ref[...], w_ref[...],
                            preferred_element_type=jnp.float32)

    @pl.when(k == pl.num_programs(1) - 1)
    def _finalize():
        t = (acc_ref[...] + b_ref[...].astype(jnp.float32)
             + r_ref[...].astype(jnp.float32))
        mu = jnp.mean(t, axis=-1, keepdims=True)
        var = jnp.mean(jnp.square(t - mu), axis=-1, keepdims=True)
        y = (t - mu) * jax.lax.rsqrt(var + eps)
        o_ref[...] = (y * g_ref[...].astype(jnp.float32)
                      + bb_ref[...].astype(jnp.float32)).astype(o_ref.dtype)


def _flash_sdpa_kernel(q_ref, k_ref, v_ref, o_ref, m_sc, l_sc, acc_sc):
    """Flash attention with online softmax, transposed accumulator layout.

    grid = (BH//bh, S//tq, S//tkv).  Scores are kept as (bh, tkv, tq) and the output
    accumulator as (bh, Dh, tq), so the output block's minor dim is tq (lane-dense,
    a multiple of 128 at realistic sequence lengths) instead of Dh < 128 -> the final
    store is unmasked and no in-kernel relayout is needed.  The softmax scale is
    pre-folded into the Q projection; softmax math stays in f32 (v5e has no bf16
    VPU/EUP).  NOTE(perf): sweep pipeline_mode=pl.Buffered(3) on the K/V specs if the
    per-kv-step DMA shows up exposed at small Dh.
    """
    kv = pl.program_id(2)

    @pl.when(kv == 0)
    def _init():
        m_sc[...] = jnp.full(m_sc.shape, -jnp.inf, jnp.float32)
        l_sc[...] = jnp.zeros(l_sc.shape, jnp.float32)
        acc_sc[...] = jnp.zeros(acc_sc.shape, jnp.float32)

    # s_t[b, kk, qq] = sum_d K[b,kk,d] * Q[b,qq,d]   (scores, transposed)
    s_t = jax.lax.dot_general(
        k_ref[...], q_ref[...],
        dimension_numbers=(((2,), (2,)), ((0,), (0,))),
        preferred_element_type=jnp.float32)                    # (bh, tkv, tq) f32

    m_prev = m_sc[...]
    m_new = jnp.maximum(m_prev, jnp.max(s_t, axis=1, keepdims=True))   # (bh, 1, tq)
    alpha = jnp.exp(m_prev - m_new)
    p_t = jnp.exp(s_t - m_new)                                 # (bh, tkv, tq)
    l_sc[...] = alpha * l_sc[...] + jnp.sum(p_t, axis=1, keepdims=True)

    # pv[b, d, qq] = sum_k V[b,k,d] * p_t[b,k,qq]
    pv = jax.lax.dot_general(
        v_ref[...], p_t.astype(v_ref.dtype),
        dimension_numbers=(((1,), (1,)), ((0,), (0,))),
        preferred_element_type=jnp.float32)                    # (bh, Dh, tq) f32
    acc_sc[...] = alpha * acc_sc[...] + pv
    m_sc[...] = m_new

    @pl.when(kv == pl.num_programs(2) - 1)
    def _finalize():
        inv_l = pl.reciprocal(l_sc[...], approx=True)          # EUP, nearly free
        o_ref[...] = (acc_sc[...] * inv_l).astype(o_ref.dtype)


# ------------------------- wrappers -------------------------

def pallas_linear(x, w, b, *, out_dtype=None):
    """Tiled, pipelined y = x @ w + b."""
    M, K = x.shape
    _, N = w.shape
    out_dtype = x.dtype if out_dtype is None else out_dtype
    tm = _tile(M, TM_PREF, 8)
    tn = _tile(N, TN_PREF, 128)
    tk = _tile(K, TK_PREF, 128)
    grid = (M // tm, N // tn, K // tk)
    return pl.pallas_call(
        _matmul_bias_kernel,
        out_shape=jax.ShapeDtypeStruct((M, N), out_dtype),
        grid_spec=pltpu.PrefetchScalarGridSpec(
            num_scalar_prefetch=0,
            grid=grid,
            in_specs=[
                pl.BlockSpec((tm, tk), lambda i, j, kk: (i, kk)),
                pl.BlockSpec((tk, tn), lambda i, j, kk: (kk, j)),
                pl.BlockSpec((1, tn), lambda i, j, kk: (0, j)),
            ],
            out_specs=pl.BlockSpec((tm, tn), lambda i, j, kk: (i, j)),
            scratch_shapes=[pltpu.VMEM((tm, tn), jnp.float32)],
        ),
        compiler_params=pltpu.CompilerParams(
            dimension_semantics=("parallel", "parallel", "arbitrary"),
            vmem_limit_bytes=VMEM_LIMIT_BYTES,
        ),
    )(x, w, b.reshape(1, N).astype(jnp.float32))


def pallas_qkv_fused(x, wv, wq, wk, bv, bq, bk, *, out_dtype):
    """Self-attention fast path: V, Q, K = x@wV+bV, x@wQ+bQ, x@wK+bK in one kernel.

    One x tile is reused for all three matmuls (3x arithmetic intensity on the x
    stream) and the three results are separate outputs (no (M, 3D) slicing)."""
    M, K = x.shape
    _, N = wv.shape
    tm = _tile(M, TM_PREF, 8)
    tn = _tile(N, TN_PREF, 128)
    tk = _tile(K, TK_PREF, 128)
    grid = (M // tm, N // tn, K // tk)
    out_sds = jax.ShapeDtypeStruct((M, N), out_dtype)
    w_spec = pl.BlockSpec((tk, tn), lambda i, j, kk: (kk, j))
    b_spec = pl.BlockSpec((1, tn), lambda i, j, kk: (0, j))
    o_spec = pl.BlockSpec((tm, tn), lambda i, j, kk: (i, j))
    return pl.pallas_call(
        _qkv_fused_kernel,
        out_shape=(out_sds, out_sds, out_sds),
        grid_spec=pltpu.PrefetchScalarGridSpec(
            num_scalar_prefetch=0,
            grid=grid,
            in_specs=[
                pl.BlockSpec((tm, tk), lambda i, j, kk: (i, kk)),
                w_spec, w_spec, w_spec,
                b_spec, b_spec, b_spec,
            ],
            out_specs=[o_spec, o_spec, o_spec],
            scratch_shapes=[pltpu.VMEM((tm, tn), jnp.float32)] * 3,
        ),
        compiler_params=pltpu.CompilerParams(
            dimension_semantics=("parallel", "parallel", "arbitrary"),
            vmem_limit_bytes=VMEM_LIMIT_BYTES,
        ),
    )(x, wv, wq, wk,
      bv.reshape(1, N).astype(jnp.float32),
      bq.reshape(1, N).astype(jnp.float32),
      bk.reshape(1, N).astype(jnp.float32))


def pallas_linear_residual_layernorm(x, w, b, resid, gamma, beta, *, eps=1e-5):
    """Fused y = LayerNorm(x @ w + b + resid) * gamma + beta (single HBM round trip).

    The residual is streamed in the matmul dtype (bf16 by default) to halve its HBM
    traffic; all LN math is f32.  Output stays f32 to match the module's dtype.
    """
    M, K = x.shape
    _, N = w.shape
    tm = _tile(M, LN_TM_PREF, 8)
    tk = _tile(K, TK_PREF, 128)
    grid = (M // tm, K // tk)
    kern = functools.partial(_matmul_bias_residual_ln_kernel, eps=eps)
    return pl.pallas_call(
        kern,
        out_shape=jax.ShapeDtypeStruct((M, N), jnp.float32),
        grid_spec=pltpu.PrefetchScalarGridSpec(
            num_scalar_prefetch=0,
            grid=grid,
            in_specs=[
                pl.BlockSpec((tm, tk), lambda i, kk: (i, kk)),
                pl.BlockSpec((tk, N), lambda i, kk: (kk, 0)),
                pl.BlockSpec((1, N), lambda i, kk: (0, 0)),
                pl.BlockSpec((tm, N), lambda i, kk: (i, 0)),
                pl.BlockSpec((1, N), lambda i, kk: (0, 0)),
                pl.BlockSpec((1, N), lambda i, kk: (0, 0)),
            ],
            out_specs=pl.BlockSpec((tm, N), lambda i, kk: (i, 0)),
            scratch_shapes=[pltpu.VMEM((tm, N), jnp.float32)],
        ),
        compiler_params=pltpu.CompilerParams(
            dimension_semantics=("parallel", "arbitrary"),
            vmem_limit_bytes=VMEM_LIMIT_BYTES,
        ),
    )(x, w, b.reshape(1, N).astype(jnp.float32), resid,
      gamma.reshape(1, N).astype(jnp.float32),
      beta.reshape(1, N).astype(jnp.float32))


def pallas_flash_sdpa(q, k, v):
    """Flash-style scaled-dot-product attention over (BH, S, Dh) tensors.

    Returns the context in transposed layout (BH, Dh, S) so the kernel's output
    store is lane-dense along the sequence axis; the caller undoes the transpose.
    The softmax scale must already be folded into q (done in the Q projection).
    """
    BH, S, Dh = q.shape
    bh = _tile(BH, BH_PREF, 1)
    tq = _tile(S, TQ_PREF, 128)    # tq is the output's lane dim -> 128-aligned or full
    tkv = _tile(S, TKV_PREF, 8)
    grid = (BH // bh, S // tq, S // tkv)
    return pl.pallas_call(
        _flash_sdpa_kernel,
        out_shape=jax.ShapeDtypeStruct((BH, Dh, S), q.dtype),
        grid_spec=pltpu.PrefetchScalarGridSpec(
            num_scalar_prefetch=0,
            grid=grid,
            in_specs=[
                pl.BlockSpec((bh, tq, Dh), lambda b, i, j: (b, i, 0)),
                pl.BlockSpec((bh, tkv, Dh), lambda b, i, j: (b, j, 0)),
                pl.BlockSpec((bh, tkv, Dh), lambda b, i, j: (b, j, 0)),
            ],
            out_specs=pl.BlockSpec((bh, Dh, tq), lambda b, i, j: (b, 0, i)),
            scratch_shapes=[
                pltpu.VMEM((bh, 1, tq), jnp.float32),    # running max m
                pltpu.VMEM((bh, 1, tq), jnp.float32),    # running sum l
                pltpu.VMEM((bh, Dh, tq), jnp.float32),   # output accumulator
            ],
        ),
        compiler_params=pltpu.CompilerParams(
            dimension_semantics=("parallel", "parallel", "arbitrary"),
            vmem_limit_bytes=VMEM_LIMIT_BYTES,
        ),
    )(q, k, v)


# ------------------------- parameter prep & module forward -------------------------

def prepare_mha_params(params, num_head, matmul_dtype=jnp.bfloat16):
    """One-time parameter preparation (do this OUTSIDE the jitted forward):
    cast weights to the MXU dtype and fold the softmax scale into the Q projection,
    so no per-call weight casting / concatenation / scaling traffic remains."""
    D = params["wQ"].shape[0]
    dim_head = D // num_head
    scale = float(dim_head) ** (-0.5)
    return dict(
        wV=params["wV"].astype(matmul_dtype),
        wK=params["wK"].astype(matmul_dtype),
        wQ=(params["wQ"] * scale).astype(matmul_dtype),
        wO=params["wO"].astype(matmul_dtype),
        bV=params["bV"].astype(jnp.float32),
        bK=params["bK"].astype(jnp.float32),
        bQ=(params["bQ"] * scale).astype(jnp.float32),
        bO=params["bO"].astype(jnp.float32),
        ln_g=params["ln_g"].astype(jnp.float32),
        ln_b=params["ln_b"].astype(jnp.float32),
    )


def multi_head_attention_forward(prepared, x, K_in, Q_in, num_head,
                                 *, matmul_dtype=jnp.bfloat16):
    """Reproduces Multi_Head_Attention.forward using the prepared params.

    matmul_dtype: dtype fed to the MXU (bf16 recommended; accumulation, softmax and
    LayerNorm always run in f32).  Must match the dtype used in prepare_mha_params.
    Dropout exists in the reference __init__ but is never applied in forward -> omitted.
    """
    B, S, D = x.shape
    dim_head = D // num_head
    M = B * S

    x2 = x.reshape(M, D)
    cast = lambda a: a.astype(matmul_dtype)

    if (Q_in is x) and (K_in is x):
        # Self-attention fast path: one x tile drives V/Q/K; three separate outputs.
        V, Q, K = pallas_qkv_fused(
            cast(x2), prepared["wV"], prepared["wQ"], prepared["wK"],
            prepared["bV"], prepared["bQ"], prepared["bK"], out_dtype=matmul_dtype)
    else:
        V = pallas_linear(cast(x2), prepared["wV"], prepared["bV"],
                          out_dtype=matmul_dtype)
        Q = pallas_linear(cast(Q_in.reshape(M, D)), prepared["wQ"], prepared["bQ"],
                          out_dtype=matmul_dtype)
        K = pallas_linear(cast(K_in.reshape(M, D)), prepared["wK"], prepared["bK"],
                          out_dtype=matmul_dtype)

    # torch .view(batch*num_head, -1, dim_head) on a contiguous tensor == C-order reshape.
    Q = Q.reshape(B * num_head, S, dim_head)
    K = K.reshape(B * num_head, S, dim_head)
    V = V.reshape(B * num_head, S, dim_head)

    # Softmax scale already folded into Q.  Kernel returns (BH, Dh, S) for lane-dense
    # stores; a cheap wrapper transpose restores the reference layout.
    ctx_t = pallas_flash_sdpa(Q, K, V)
    context = jnp.transpose(ctx_t, (0, 2, 1)).reshape(M, D)

    # Fused: out = LayerNorm(context @ wO + bO + x)   (residual streamed in bf16)
    out = pallas_linear_residual_layernorm(
        context, prepared["wO"], prepared["bO"], cast(x2),
        prepared["ln_g"], prepared["ln_b"])
    return out.reshape(B, S, D)


# ------------------------- pure-JAX reference (for self-check) -------------------------

def reference_forward(params, x, K_in, Q_in, num_head):
    B, S, D = x.shape
    dh = D // num_head
    x2 = x.reshape(-1, D)
    V = x2 @ params["wV"] + params["bV"]
    Q = Q_in.reshape(-1, D) @ params["wQ"] + params["bQ"]
    K = K_in.reshape(-1, D) @ params["wK"] + params["bK"]
    Q = Q.reshape(B * num_head, -1, dh)
    K = K.reshape(B * num_head, -1, dh)
    V = V.reshape(B * num_head, -1, dh)
    s = jnp.einsum("bqd,bkd->bqk", Q, K) * (dh ** -0.5)
    p = jax.nn.softmax(s, axis=-1)
    ctx = jnp.einsum("bqk,bkd->bqd", p, V).reshape(-1, D)
    out = ctx @ params["wO"] + params["bO"] + x2
    mu = out.mean(-1, keepdims=True)
    var = ((out - mu) ** 2).mean(-1, keepdims=True)
    out = (out - mu) * jax.lax.rsqrt(var + 1e-5) * params["ln_g"] + params["ln_b"]
    return out.reshape(B, S, D)


# ------------------------- main -------------------------

if __name__ == "__main__":
    B, S, D, H = 2, 8, 32, 4  # batch, seq, dim_model, num_head

    key = jax.random.PRNGKey(0)
    keys = jax.random.split(key, 12)

    def init_linear(kw, kb, din, dout):
        w = jax.random.normal(kw, (din, dout), jnp.float32) * 0.05
        b = jax.random.normal(kb, (dout,), jnp.float32) * 0.05
        return w, b

    wV, bV = init_linear(keys[0], keys[1], D, D)
    wK, bK = init_linear(keys[2], keys[3], D, D)
    wQ, bQ = init_linear(keys[4], keys[5], D, D)
    wO, bO = init_linear(keys[6], keys[7], D, D)

    params = dict(
        wV=wV, bV=bV, wK=wK, bK=bK, wQ=wQ, bQ=bQ, wO=wO, bO=bO,
        ln_g=jnp.ones((D,), jnp.float32),
        ln_b=jnp.zeros((D,), jnp.float32),
    )
    prepared = prepare_mha_params(params, H)   # one-time weight cast + scale fold

    x = jax.random.normal(keys[8], (B, S, D), jnp.float32)
    K_in = jax.random.normal(keys[9], (B, S, D), jnp.float32)
    Q_in = jax.random.normal(keys[10], (B, S, D), jnp.float32)

    # Cross-attention style call (distinct x / K / Q), jitted.
    fwd = jax.jit(functools.partial(multi_head_attention_forward, num_head=H))
    out = jax.block_until_ready(fwd(prepared, x, K_in, Q_in))
    assert out.shape == (B, S, D) and out.dtype == jnp.float32

    ref = reference_forward(params, x, K_in, Q_in, H)
    err = float(jnp.max(jnp.abs(out - ref)))
    assert err < 5e-2, f"cross-attention max abs err {err}"

    # Self-attention call (same tensor for x/K/Q) exercises the fused QKV projection path.
    out2 = jax.block_until_ready(
        multi_head_attention_forward(prepared, x, x, x, num_head=H))
    ref2 = reference_forward(params, x, x, x, H)
    err2 = float(jnp.max(jnp.abs(out2 - ref2)))
    assert err2 < 5e-2, f"self-attention max abs err {err2}"

    print("KERNEL_OK")
</pallas_src>

<mosaic_0001>
module attributes {stable_mosaic.version = 11 : i64} {
  func.func @_matmul_bias_kernel(%arg0: i32, %arg1: i32, %arg2: i32, %arg3: memref<16x32xbf16, #tpu.memory_space<vmem>>, %arg4: memref<32x32xbf16, #tpu.memory_space<vmem>>, %arg5: memref<1x32xf32, #tpu.memory_space<vmem>>, %arg6: memref<16x32xbf16, #tpu.memory_space<vmem>>, %arg7: memref<16x32xf32, #tpu.memory_space<vmem>>) attributes {dimension_semantics = [#tpu.dimension_semantics<parallel>, #tpu.dimension_semantics<parallel>, #tpu.dimension_semantics<arbitrary>], iteration_bounds = array<i64: 1, 1, 1>, scalar_prefetch = 0 : i64, scratch_operands = 1 : i64, tpu.core_type = #tpu.core_type<tc>, window_params = [{transform_indices = @transform_0, window_bounds = array<i64: 16, 32>}, {transform_indices = @transform_1, window_bounds = array<i64: 32, 32>}, {transform_indices = @transform_2, window_bounds = array<i64: 1, 32>}, {transform_indices = @transform_3, window_bounds = array<i64: 16, 32>}]} {
    %c0_i32 = arith.constant 0 : i32
    %0 = arith.cmpi eq, %arg2, %c0_i32 : i32
    %1 = arith.extui %0 : i1 to i32
    %c0_i32_0 = arith.constant 0 : i32
    %2 = arith.cmpi ne, %1, %c0_i32_0 : i32
    scf.if %2 {
      %cst_10 = arith.constant 0.000000e+00 : f32
      %12 = vector.broadcast %cst_10 : f32 to vector<16x32xf32>
      %c0_11 = arith.constant 0 : index
      %c0_12 = arith.constant 0 : index
      %13 = vector.load %arg7[%c0_11, %c0_12] : memref<16x32xf32, #tpu.memory_space<vmem>>, vector<16x32xf32>
      tpu.vector_store %arg7[%c0_11, %c0_12], %12 {strides = array<i32>} : memref<16x32xf32, #tpu.memory_space<vmem>>, vector<16x32xf32>,
    } else {
    }
    %c0 = arith.constant 0 : index
    %c0_1 = arith.constant 0 : index
    %3 = vector.load %arg7[%c0, %c0_1] : memref<16x32xf32, #tpu.memory_space<vmem>>, vector<16x32xf32>
    %c0_2 = arith.constant 0 : index
    %c0_3 = arith.constant 0 : index
    %4 = vector.load %arg3[%c0_2, %c0_3] : memref<16x32xbf16, #tpu.memory_space<vmem>>, vector<16x32xbf16>
    %c0_4 = arith.constant 0 : index
    %c0_5 = arith.constant 0 : index
    %5 = vector.load %arg4[%c0_4, %c0_5] : memref<32x32xbf16, #tpu.memory_space<vmem>>, vector<32x32xbf16>
    %cst = arith.constant dense<0.000000e+00> : vector<16x32xf32>
    %6 = tpu.matmul %4, %5, %cst {dimension_numbers = #tpu.dot_dimension_numbers<[1], [0], [0], [1], [0, 0, 1, 1], [], []>} : vector<16x32xbf16>, vector<32x32xbf16>, vector<16x32xf32> -> vector<16x32xf32>
    %7 = arith.addf %3, %6 : vector<16x32xf32>
    %c0_6 = arith.constant 0 : index
    %c0_7 = arith.constant 0 : index
    %8 = vector.load %arg7[%c0_6, %c0_7] : memref<16x32xf32, #tpu.memory_space<vmem>>, vector<16x32xf32>
    tpu.vector_store %arg7[%c0_6, %c0_7], %7 {strides = array<i32>} : memref<16x32xf32, #tpu.memory_space<vmem>>, vector<16x32xf32>,
    %c0_i32_8 = arith.constant 0 : i32
    %9 = arith.cmpi eq, %arg2, %c0_i32_8 : i32
    %10 = arith.extui %9 : i1 to i32
    %c0_i32_9 = arith.constant 0 : i32
    %11 = arith.cmpi ne, %10, %c0_i32_9 : i32
    scf.if %11 {
      %c0_10 = arith.constant 0 : index
      %c0_11 = arith.constant 0 : index
      %12 = vector.load %arg7[%c0_10, %c0_11] : memref<16x32xf32, #tpu.memory_space<vmem>>, vector<16x32xf32>
      %c0_12 = arith.constant 0 : index
      %c0_13 = arith.constant 0 : index
      %13 = vector.load %arg5[%c0_12, %c0_13] : memref<1x32xf32, #tpu.memory_space<vmem>>, vector<1x32xf32>
      %14 = vector.broadcast %13 : vector<1x32xf32> to vector<16x32xf32>
      %15 = arith.addf %12, %14 : vector<16x32xf32>
      %16 = arith.truncf %15 : vector<16x32xf32> to vector<16x32xbf16>
      %c0_14 = arith.constant 0 : index
      %c0_15 = arith.constant 0 : index
      %17 = vector.load %arg6[%c0_14, %c0_15] : memref<16x32xbf16, #tpu.memory_space<vmem>>, vector<16x32xbf16>
      tpu.vector_store %arg6[%c0_14, %c0_15], %16 {strides = array<i32>} : memref<16x32xbf16, #tpu.memory_space<vmem>>, vector<16x32xbf16>,
    } else {
    }
    return
  }
  func.func @transform_0(%arg0: i32, %arg1: i32, %arg2: i32) -> (i32, i32) {
    %c0_i32 = arith.constant 0 : i32
    return %arg0, %arg2 : i32, i32
  }
  func.func @transform_1(%arg0: i32, %arg1: i32, %arg2: i32) -> (i32, i32) {
    %c0_i32 = arith.constant 0 : i32
    return %arg2, %arg1 : i32, i32
  }
  func.func @transform_2(%arg0: i32, %arg1: i32, %arg2: i32) -> (i32, i32) {
    %c0_i32 = arith.constant 0 : i32
    %c0_i32_0 = arith.constant 0 : i32
    return %c0_i32, %arg1 : i32, i32
  }
  func.func @transform_3(%arg0: i32, %arg1: i32, %arg2: i32) -> (i32, i32) {
    %c0_i32 = arith.constant 0 : i32
    return %arg0, %arg1 : i32, i32
  }
}

module attributes {stable_mosaic.version = 11 : i64} {
  func.func @_flash_sdpa_kernel(%arg0: i32, %arg1: i32, %arg2: i32, %arg3: memref<4x8x8xbf16, #tpu.memory_space<vmem>>, %arg4: memref<4x8x8xbf16, #tpu.memory_space<vmem>>, %arg5: memref<4x8x8xbf16, #tpu.memory_space<vmem>>, %arg6: memref<4x8x8xbf16, #tpu.memory_space<vmem>>, %arg7: memref<4x1x8xf32, #tpu.memory_space<vmem>>, %arg8: memref<4x1x8xf32, #tpu.memory_space<vmem>>, %arg9: memref<4x8x8xf32, #tpu.memory_space<vmem>>) attributes {dimension_semantics = [#tpu.dimension_semantics<parallel>, #tpu.dimension_semantics<parallel>, #tpu.dimension_semantics<arbitrary>], iteration_bounds = array<i64: 2, 1, 1>, scalar_prefetch = 0 : i64, scratch_operands = 3 : i64, tpu.core_type = #tpu.core_type<tc>, window_params = [{transform_indices = @transform_0, window_bounds = array<i64: 4, 8, 8>}, {transform_indices = @transform_1, window_bounds = array<i64: 4, 8, 8>}, {transform_indices = @transform_2, window_bounds = array<i64: 4, 8, 8>}, {transform_indices = @transform_3, window_bounds = array<i64: 4, 8, 8>}]} {
    %c0_i32 = arith.constant 0 : i32
    %0 = arith.cmpi eq, %arg2, %c0_i32 : i32
    %1 = arith.extui %0 : i1 to i32
    %c0_i32_0 = arith.constant 0 : i32
    %2 = arith.cmpi ne, %1, %c0_i32_0 : i32
    scf.if %2 {
      %cst_32 = arith.constant 0xFF800000 : f32
      %33 = vector.broadcast %cst_32 : f32 to vector<4x1x8xf32>
      %c0_33 = arith.constant 0 : index
      %c0_34 = arith.constant 0 : index
      %c0_35 = arith.constant 0 : index
      %34 = vector.load %arg7[%c0_33, %c0_34, %c0_35] : memref<4x1x8xf32, #tpu.memory_space<vmem>>, vector<4x1x8xf32>
      tpu.vector_store %arg7[%c0_33, %c0_34, %c0_35], %33 {strides = array<i32>} : memref<4x1x8xf32, #tpu.memory_space<vmem>>, vector<4x1x8xf32>,
      %cst_36 = arith.constant 0.000000e+00 : f32
      %35 = vector.broadcast %cst_36 : f32 to vector<4x1x8xf32>
      %c0_37 = arith.constant 0 : index
      %c0_38 = arith.constant 0 : index
      %c0_39 = arith.constant 0 : index
      %36 = vector.load %arg8[%c0_37, %c0_38, %c0_39] : memref<4x1x8xf32, #tpu.memory_space<vmem>>, vector<4x1x8xf32>
      tpu.vector_store %arg8[%c0_37, %c0_38, %c0_39], %35 {strides = array<i32>} : memref<4x1x8xf32, #tpu.memory_space<vmem>>, vector<4x1x8xf32>,
      %cst_40 = arith.constant 0.000000e+00 : f32
      %37 = vector.broadcast %cst_40 : f32 to vector<4x8x8xf32>
      %c0_41 = arith.constant 0 : index
      %c0_42 = arith.constant 0 : index
      %c0_43 = arith.constant 0 : index
      %38 = vector.load %arg9[%c0_41, %c0_42, %c0_43] : memref<4x8x8xf32, #tpu.memory_space<vmem>>, vector<4x8x8xf32>
      tpu.vector_store %arg9[%c0_41, %c0_42, %c0_43], %37 {strides = array<i32>} : memref<4x8x8xf32, #tpu.memory_space<vmem>>, vector<4x8x8xf32>,
    } else {
    }
    %c0 = arith.constant 0 : index
    %c0_1 = arith.constant 0 : index
    %c0_2 = arith.constant 0 : index
    %3 = vector.load %arg4[%c0, %c0_1, %c0_2] : memref<4x8x8xbf16, #tpu.memory_space<vmem>>, vector<4x8x8xbf16>
    %c0_3 = arith.constant 0 : index
    %c0_4 = arith.constant 0 : index
    %c0_5 = arith.constant 0 : index
    %4 = vector.load %arg3[%c0_3, %c0_4, %c0_5] : memref<4x8x8xbf16, #tpu.memory_space<vmem>>, vector<4x8x8xbf16>
    %cst = arith.constant dense<0.000000e+00> : vector<4x8x8xf32>
    %5 = tpu.matmul %3, %4, %cst {dimension_numbers = #tpu.dot_dimension_numbers<[2], [2], [1], [1], [0, 0, 0, 1, 1, 1], [0], [0]>} : vector<4x8x8xbf16>, vector<4x8x8xbf16>, vector<4x8x8xf32> -> vector<4x8x8xf32>
    %c0_6 = arith.constant 0 : index
    %c0_7 = arith.constant 0 : index
    %c0_8 = arith.constant 0 : index
    %6 = vector.load %arg7[%c0_6, %c0_7, %c0_8] : memref<4x1x8xf32, #tpu.memory_space<vmem>>, vector<4x1x8xf32>
    %cst_9 = arith.constant dense<0xFF800000> : vector<4x8xf32>
    %7 = vector.multi_reduction <maximumf>, %5, %cst_9 [1] : vector<4x8x8xf32> to vector<4x8xf32>
    %8 = vector.shape_cast %7 : vector<4x8xf32> to vector<4x1x8xf32>
    %9 = arith.maximumf %6, %8 : vector<4x1x8xf32>
    %10 = arith.subf %6, %9 : vector<4x1x8xf32>
    %11 = math.exp %10 : vector<4x1x8xf32>
    %12 = vector.broadcast %9 : vector<4x1x8xf32> to vector<4x8x8xf32>
    %13 = arith.subf %5, %12 : vector<4x8x8xf32>
    %14 = math.exp %13 : vector<4x8x8xf32>
    %c0_10 = arith.constant 0 : index
    %c0_11 = arith.constant 0 : index
    %c0_12 = arith.constant 0 : index
    %15 = vector.load %arg8[%c0_10, %c0_11, %c0_12] : memref<4x1x8xf32, #tpu.memory_space<vmem>>, vector<4x1x8xf32>
    %16 = arith.mulf %11, %15 : vector<4x1x8xf32>
    %cst_13 = arith.constant dense<0.000000e+00> : vector<4x8xf32>
    %17 = vector.multi_reduction <add>, %14, %cst_13 [1] : vector<4x8x8xf32> to vector<4x8xf32>
    %18 = vector.shape_cast %17 : vector<4x8xf32> to vector<4x1x8xf32>
    %19 = arith.addf %16, %18 : vector<4x1x8xf32>
    %c0_14 = arith.constant 0 : index
    %c0_15 = arith.constant 0 : index
    %c0_16 = arith.constant 0 : index
    %20 = vector.load %arg8[%c0_14, %c0_15, %c0_16] : memref<4x1x8xf32, #tpu.memory_space<vmem>>, vector<4x1x8xf32>
    tpu.vector_store %arg8[%c0_14, %c0_15, %c0_16], %19 {strides = array<i32>} : memref<4x1x8xf32, #tpu.memory_space<vmem>>, vector<4x1x8xf32>,
    %c0_17 = arith.constant 0 : index
    %c0_18 = arith.constant 0 : index
    %c0_19 = arith.constant 0 : index
    %21 = vector.load %arg5[%c0_17, %c0_18, %c0_19] : memref<4x8x8xbf16, #tpu.memory_space<vmem>>, vector<4x8x8xbf16>
    %22 = arith.truncf %14 : vector<4x8x8xf32> to vector<4x8x8xbf16>
    %cst_20 = arith.constant dense<0.000000e+00> : vector<4x8x8xf32>
    %23 = tpu.matmul %21, %22, %cst_20 {dimension_numbers = #tpu.dot_dimension_numbers<[1], [1], [2], [2], [0, 0, 0, 2, 1, 2], [0], [0]>} : vector<4x8x8xbf16>, vector<4x8x8xbf16>, vector<4x8x8xf32> -> vector<4x8x8xf32>
    %c0_21 = arith.constant 0 : index
    %c0_22 = arith.constant 0 : index
    %c0_23 = arith.constant 0 : index
    %24 = vector.load %arg9[%c0_21, %c0_22, %c0_23] : memref<4x8x8xf32, #tpu.memory_space<vmem>>, vector<4x8x8xf32>
    %25 = vector.broadcast %11 : vector<4x1x8xf32> to vector<4x8x8xf32>
    %26 = arith.mulf %25, %24 : vector<4x8x8xf32>
    %27 = arith.addf %26, %23 : vector<4x8x8xf32>
    %c0_24 = arith.constant 0 : index
    %c0_25 = arith.constant 0 : index
    %c0_26 = arith.constant 0 : index
    %28 = vector.load %arg9[%c0_24, %c0_25, %c0_26] : memref<4x8x8xf32, #tpu.memory_space<vmem>>, vector<4x8x8xf32>
    tpu.vector_store %arg9[%c0_24, %c0_25, %c0_26], %27 {strides = array<i32>} : memref<4x8x8xf32, #tpu.memory_space<vmem>>, vector<4x8x8xf32>,
    %c0_27 = arith.constant 0 : index
    %c0_28 = arith.constant 0 : index
    %c0_29 = arith.constant 0 : index
    %29 = vector.load %arg7[%c0_27, %c0_28, %c0_29] : memref<4x1x8xf32, #tpu.memory_space<vmem>>, vector<4x1x8xf32>
    tpu.vector_store %arg7[%c0_27, %c0_28, %c0_29], %9 {strides = array<i32>} : memref<4x1x8xf32, #tpu.memory_space<vmem>>, vector<4x1x8xf32>,
    %c0_i32_30 = arith.constant 0 : i32
    %30 = arith.cmpi eq, %arg2, %c0_i32_30 : i32
    %31 = arith.extui %30 : i1 to i32
    %c0_i32_31 = arith.constant 0 : i32
    %32 = arith.cmpi ne, %31, %c0_i32_31 : i32
    scf.if %32 {
      %c0_32 = arith.constant 0 : index
      %c0_33 = arith.constant 0 : index
      %c0_34 = arith.constant 0 : index
      %33 = vector.load %arg8[%c0_32, %c0_33, %c0_34] : memref<4x1x8xf32, #tpu.memory_space<vmem>>, vector<4x1x8xf32>
      %34 = tpu.reciprocal %33 {approx = true} : vector<4x1x8xf32> -> vector<4x1x8xf32>
      %c0_35 = arith.constant 0 : index
      %c0_36 = arith.constant 0 : index
      %c0_37 = arith.constant 0 : index
      %35 = vector.load %arg9[%c0_35, %c0_36, %c0_37] : memref<4x8x8xf32, #tpu.memory_space<vmem>>, vector<4x8x8xf32>
      %36 = vector.broadcast %34 : vector<4x1x8xf32> to vector<4x8x8xf32>
      %37 = arith.mulf %35, %36 : vector<4x8x8xf32>
      %38 = arith.truncf %37 : vector<4x8x8xf32> to vector<4x8x8xbf16>
      %c0_38 = arith.constant 0 : index
      %c0_39 = arith.constant 0 : index
      %c0_40 = arith.constant 0 : index
      %39 = vector.load %arg6[%c0_38, %c0_39, %c0_40] : memref<4x8x8xbf16, #tpu.memory_space<vmem>>, vector<4x8x8xbf16>
      tpu.vector_store %arg6[%c0_38, %c0_39, %c0_40], %38 {strides = array<i32>} : memref<4x8x8xbf16, #tpu.memory_space<vmem>>, vector<4x8x8xbf16>,
    } else {
    }
    return
  }
  func.func @transform_0(%arg0: i32, %arg1: i32, %arg2: i32) -> (i32, i32, i32) {
    %c0_i32 = arith.constant 0 : i32
    %c0_i32_0 = arith.constant 0 : i32
    return %arg0, %arg1, %c0_i32 : i32, i32, i32
  }
  func.func @transform_1(%arg0: i32, %arg1: i32, %arg2: i32) -> (i32, i32, i32) {
    %c0_i32 = arith.constant 0 : i32
    %c0_i32_0 = arith.constant 0 : i32
    return %arg0, %arg2, %c0_i32 : i32, i32, i32
  }
  func.func @transform_2(%arg0: i32, %arg1: i32, %arg2: i32) -> (i32, i32, i32) {
    %c0_i32 = arith.constant 0 : i32
    %c0_i32_0 = arith.constant 0 : i32
    return %arg0, %arg2, %c0_i32 : i32, i32, i32
  }
  func.func @transform_3(%arg0: i32, %arg1: i32, %arg2: i32) -> (i32, i32, i32) {
    %c0_i32 = arith.constant 0 : i32
    %c0_i32_0 = arith.constant 0 : i32
    return %arg0, %c0_i32, %arg1 : i32, i32, i32
  }
}

module attributes {stable_mosaic.version = 11 : i64} {
  func.func @_matmul_bias_residual_ln_kernel(%arg0: i32, %arg1: i32, %arg2: memref<16x32xbf16, #tpu.memory_space<vmem>>, %arg3: memref<32x32xbf16, #tpu.memory_space<vmem>>, %arg4: memref<1x32xf32, #tpu.memory_space<vmem>>, %arg5: memref<16x32xbf16, #tpu.memory_space<vmem>>, %arg6: memref<1x32xf32, #tpu.memory_space<vmem>>, %arg7: memref<1x32xf32, #tpu.memory_space<vmem>>, %arg8: memref<16x32xf32, #tpu.memory_space<vmem>>, %arg9: memref<16x32xf32, #tpu.memory_space<vmem>>) attributes {dimension_semantics = [#tpu.dimension_semantics<parallel>, #tpu.dimension_semantics<arbitrary>], iteration_bounds = array<i64: 1, 1>, scalar_prefetch = 0 : i64, scratch_operands = 1 : i64, tpu.core_type = #tpu.core_type<tc>, window_params = [{transform_indices = @transform_0, window_bounds = array<i64: 16, 32>}, {transform_indices = @transform_1, window_bounds = array<i64: 32, 32>}, {pipeline_mode = #tpu.pipeline_mode<synchronous>, transform_indices = @transform_2, window_bounds = array<i64: 1, 32>}, {transform_indices = @transform_3, window_bounds = array<i64: 16, 32>}, {pipeline_mode = #tpu.pipeline_mode<synchronous>, transform_indices = @transform_4, window_bounds = array<i64: 1, 32>}, {pipeline_mode = #tpu.pipeline_mode<synchronous>, transform_indices = @transform_5, window_bounds = array<i64: 1, 32>}, {transform_indices = @transform_6, window_bounds = array<i64: 16, 32>}]} {
    %c0_i32 = arith.constant 0 : i32
    %0 = arith.cmpi eq, %arg1, %c0_i32 : i32
    %1 = arith.extui %0 : i1 to i32
    %c0_i32_0 = arith.constant 0 : i32
    %2 = arith.cmpi ne, %1, %c0_i32_0 : i32
    scf.if %2 {
      %cst_10 = arith.constant 0.000000e+00 : f32
      %12 = vector.broadcast %cst_10 : f32 to vector<16x32xf32>
      %c0_11 = arith.constant 0 : index
      %c0_12 = arith.constant 0 : index
      %13 = vector.load %arg9[%c0_11, %c0_12] : memref<16x32xf32, #tpu.memory_space<vmem>>, vector<16x32xf32>
      tpu.vector_store %arg9[%c0_11, %c0_12], %12 {strides = array<i32>} : memref<16x32xf32, #tpu.memory_space<vmem>>, vector<16x32xf32>,
    } else {
    }
    %c0 = arith.constant 0 : index
    %c0_1 = arith.constant 0 : index
    %3 = vector.load %arg9[%c0, %c0_1] : memref<16x32xf32, #tpu.memory_space<vmem>>, vector<16x32xf32>
    %c0_2 = arith.constant 0 : index
    %c0_3 = arith.constant 0 : index
    %4 = vector.load %arg2[%c0_2, %c0_3] : memref<16x32xbf16, #tpu.memory_space<vmem>>, vector<16x32xbf16>
    %c0_4 = arith.constant 0 : index
    %c0_5 = arith.constant 0 : index
    %5 = vector.load %arg3[%c0_4, %c0_5] : memref<32x32xbf16, #tpu.memory_space<vmem>>, vector<32x32xbf16>
    %cst = arith.constant dense<0.000000e+00> : vector<16x32xf32>
    %6 = tpu.matmul %4, %5, %cst {dimension_numbers = #tpu.dot_dimension_numbers<[1], [0], [0], [1], [0, 0, 1, 1], [], []>} : vector<16x32xbf16>, vector<32x32xbf16>, vector<16x32xf32> -> vector<16x32xf32>
    %7 = arith.addf %3, %6 : vector<16x32xf32>
    %c0_6 = arith.constant 0 : index
    %c0_7 = arith.constant 0 : index
    %8 = vector.load %arg9[%c0_6, %c0_7] : memref<16x32xf32, #tpu.memory_space<vmem>>, vector<16x32xf32>
    tpu.vector_store %arg9[%c0_6, %c0_7], %7 {strides = array<i32>} : memref<16x32xf32, #tpu.memory_space<vmem>>, vector<16x32xf32>,
    %c0_i32_8 = arith.constant 0 : i32
    %9 = arith.cmpi eq, %arg1, %c0_i32_8 : i32
    %10 = arith.extui %9 : i1 to i32
    %c0_i32_9 = arith.constant 0 : i32
    %11 = arith.cmpi ne, %10, %c0_i32_9 : i32
    scf.if %11 {
      %c0_10 = arith.constant 0 : index
      %c0_11 = arith.constant 0 : index
      %12 = vector.load %arg9[%c0_10, %c0_11] : memref<16x32xf32, #tpu.memory_space<vmem>>, vector<16x32xf32>
      %c0_12 = arith.constant 0 : index
      %c0_13 = arith.constant 0 : index
      %13 = vector.load %arg4[%c0_12, %c0_13] : memref<1x32xf32, #tpu.memory_space<vmem>>, vector<1x32xf32>
      %14 = vector.broadcast %13 : vector<1x32xf32> to vector<16x32xf32>
      %15 = arith.addf %12, %14 : vector<16x32xf32>
      %c0_14 = arith.constant 0 : index
      %c0_15 = arith.constant 0 : index
      %16 = vector.load %arg5[%c0_14, %c0_15] : memref<16x32xbf16, #tpu.memory_space<vmem>>, vector<16x32xbf16>
      %17 = arith.extf %16 : vector<16x32xbf16> to vector<16x32xf32>
      %18 = arith.addf %15, %17 : vector<16x32xf32>
      %cst_16 = arith.constant dense<0.000000e+00> : vector<16xf32>
      %19 = vector.multi_reduction <add>, %18, %cst_16 [1] : vector<16x32xf32> to vector<16xf32>
      %20 = vector.shape_cast %19 : vector<16xf32> to vector<16x1xf32>
      %cst_17 = arith.constant 3.200000e+01 : f32
      %21 = vector.broadcast %cst_17 : f32 to vector<16x1xf32>
      %22 = arith.divf %20, %21 : vector<16x1xf32>
      %23 = vector.broadcast %22 : vector<16x1xf32> to vector<16x32xf32>
      %24 = arith.subf %18, %23 : vector<16x32xf32>
      %25 = arith.mulf %24, %24 : vector<16x32xf32>
      %cst_18 = arith.constant dense<0.000000e+00> : vector<16xf32>
      %26 = vector.multi_reduction <add>, %25, %cst_18 [1] : vector<16x32xf32> to vector<16xf32>
      %27 = vector.shape_cast %26 : vector<16xf32> to vector<16x1xf32>
      %cst_19 = arith.constant 3.200000e+01 : f32
      %28 = vector.broadcast %cst_19 : f32 to vector<16x1xf32>
      %29 = arith.divf %27, %28 : vector<16x1xf32>
      %30 = vector.broadcast %22 : vector<16x1xf32> to vector<16x32xf32>
      %31 = arith.subf %18, %30 : vector<16x32xf32>
      %cst_20 = arith.constant 9.99999974E-6 : f32
      %32 = vector.broadcast %cst_20 : f32 to vector<16x1xf32>
      %33 = arith.addf %29, %32 : vector<16x1xf32>
      %34 = math.rsqrt %33 : vector<16x1xf32>
      %35 = vector.broadcast %34 : vector<16x1xf32> to vector<16x32xf32>
      %36 = arith.mulf %31, %35 : vector<16x32xf32>
      %c0_21 = arith.constant 0 : index
      %c0_22 = arith.constant 0 : index
      %37 = vector.load %arg6[%c0_21, %c0_22] : memref<1x32xf32, #tpu.memory_space<vmem>>, vector<1x32xf32>
      %38 = vector.broadcast %37 : vector<1x32xf32> to vector<16x32xf32>
      %39 = arith.mulf %36, %38 : vector<16x32xf32>
      %c0_23 = arith.constant 0 : index
      %c0_24 = arith.constant 0 : index
      %40 = vector.load %arg7[%c0_23, %c0_24] : memref<1x32xf32, #tpu.memory_space<vmem>>, vector<1x32xf32>
      %41 = vector.broadcast %40 : vector<1x32xf32> to vector<16x32xf32>
      %42 = arith.addf %39, %41 : vector<16x32xf32>
      %c0_25 = arith.constant 0 : index
      %c0_26 = arith.constant 0 : index
      %43 = vector.load %arg8[%c0_25, %c0_26] : memref<16x32xf32, #tpu.memory_space<vmem>>, vector<16x32xf32>
      tpu.vector_store %arg8[%c0_25, %c0_26], %42 {strides = array<i32>} : memref<16x32xf32, #tpu.memory_space<vmem>>, vector<16x32xf32>,
    } else {
    }
    return
  }
  func.func @transform_0(%arg0: i32, %arg1: i32) -> (i32, i32) {
    %c0_i32 = arith.constant 0 : i32
    return %arg0, %arg1 : i32, i32
  }
  func.func @transform_1(%arg0: i32, %arg1: i32) -> (i32, i32) {
    %c0_i32 = arith.constant 0 : i32
    %c0_i32_0 = arith.constant 0 : i32
    return %arg1, %c0_i32 : i32, i32
  }
  func.func @transform_2(%arg0: i32, %arg1: i32) -> (i32, i32) {
    %c0_i32 = arith.constant 0 : i32
    %c0_i32_0 = arith.constant 0 : i32
    %c0_i32_1 = arith.constant 0 : i32
    return %c0_i32, %c0_i32_0 : i32, i32
  }
  func.func @transform_3(%arg0: i32, %arg1: i32) -> (i32, i32) {
    %c0_i32 = arith.constant 0 : i32
    %c0_i32_0 = arith.constant 0 : i32
    return %arg0, %c0_i32 : i32, i32
  }
  func.func @transform_4(%arg0: i32, %arg1: i32) -> (i32, i32) {
    %c0_i32 = arith.constant 0 : i32
    %c0_i32_0 = arith.constant 0 : i32
    %c0_i32_1 = arith.constant 0 : i32
    return %c0_i32, %c0_i32_0 : i32, i32
  }
  func.func @transform_5(%arg0: i32, %arg1: i32) -> (i32, i32) {
    %c0_i32 = arith.constant 0 : i32
    %c0_i32_0 = arith.constant 0 : i32
    %c0_i32_1 = arith.constant 0 : i32
    return %c0_i32, %c0_i32_0 : i32, i32
  }
  func.func @transform_6(%arg0: i32, %arg1: i32) -> (i32, i32) {
    %c0_i32 = arith.constant 0 : i32
    %c0_i32_0 = arith.constant 0 : i32
    return %arg0, %c0_i32 : i32, i32
  }
}

</mosaic_0001>

<llo_original>
// kernel: multi_head_attention_forward.5
$region0: #{multi_head_attention_forward.5}
  #allocation0 [shape = 'u32[]', space=smem, size = 0x4, offset = 0x4, fixed_abs, tag = 'smem constant byte address 0x4 - core index']
  #allocation1 [shape = 'u32[144,128]{1,0:T(1,128)}', space=vmem, size = 0x12000, scoped, tag = 'internal scratch']
  #allocation2 [shape = 'f32[16,32]{1,0:T(8,128)}', space=vmem, size = 0x2000, scoped, tag = 'scratch operand']
  %s0 = inlined_call_operand.vmem [shape: bf16[16,32], index: 0, kind: input, shape index: {}]
  %s1 = inlined_call_operand.vmem [shape: bf16[32,32], index: 1, kind: input, shape index: {}]
  %s2 = inlined_call_operand.vmem [shape: f32[1,32], index: 2, kind: input, shape index: {}]
  %s3 = inlined_call_operand.vmem [shape: bf16[16,32], index: 3, kind: output, shape index: {}]
  %s4 = sld [smem:[#allocation0]]
  $region30: #{multi_head_attention_forward.5} parent=0
    _
  %s6 = ssub.s32 1, %s4
  %s7 = scalar_select 0, %s6, %s4
  // Predicated region
  $region2: #{multi_head_attention_forward.5} parent=0 // pred_check
    _
  $region3: #{multi_head_attention_forward.5} parent=0 // pred_check_branch
    %9 = sbr.rel (0) target = $region5
  $region4: #{multi_head_attention_forward.5} parent=0 // pred_region
    _
  $region5: #{multi_head_attention_forward.5} parent=0 // pred_fallthru
    _
  // Predicated region
  $region6: #{multi_head_attention_forward.5} parent=0 // pred_check
    _
  $region7: #{multi_head_attention_forward.5} parent=0 // pred_check_branch
    %11 = sbr.rel (0) target = $region9
  $region8: #{multi_head_attention_forward.5} parent=0 // pred_region
    _
  $region9: #{multi_head_attention_forward.5} parent=0 // pred_fallthru
    _
  // Predicated region
  $region10: #{multi_head_attention_forward.5} parent=0 // pred_check
    _
  $region11: #{multi_head_attention_forward.5} parent=0 // pred_check_branch
    %13 = sbr.rel (0) target = $region13
  $region12: #{multi_head_attention_forward.5} parent=0 // pred_region
    _
  $region13: #{multi_head_attention_forward.5} parent=0 // pred_fallthru
    _
  %p15 = scmp.eq.s32.totalorder 0, 0
  // Predicated region
  $region14: #{multi_head_attention_forward.5} parent=0 // pred_check
    %p16 = pneg %p15
  $region15: #{multi_head_attention_forward.5} parent=0 // pred_check_branch
    %18 = sbr.rel (%p16) target = $region17
  $region16: #{multi_head_attention_forward.5} parent=0 // pred_region
    %vm19 = vcmask 261120
    %20 = vst.msk [vmem:[#allocation2] sm:$0xff] %vm19, 0.0
    %21 = vst.msk [vmem:[#allocation2 + $0x8] sm:$0xff] %vm19, 0.0
  $region17: #{multi_head_attention_forward.5} parent=0 // pred_fallthru
    _
  %v22 = vld [vmem:[#allocation2] sm:$0xff]
  %v23 = vld [vmem:[#allocation2 + $0x8] sm:$0xff]
  %v24 = vld [vmem:[%s0] sm:$0xf]
  %v25 = vld [vmem:[%s0 + $0x4] sm:$0xf]
  %v26 = vld [vmem:[%s1] sm:$0xf]
  %v27 = vld [vmem:[%s1 + $0x4] sm:$0xf]
  %v28 = vld [vmem:[%s1 + $0x8] sm:$0xf]
  %v29 = vld [vmem:[%s1 + $0xc] sm:$0xf]
  %v32 = vunpack.c.l.b16 %v24
  %v33 = vunpack.c.l.b16 %v25
  %v34 = vpack.c.b16 %v33, %v32
  %v39 = vunpack.c.l.b16 %v26
  %v40 = vunpack.c.l.b16 %v27
  %v41 = vunpack.c.l.b16 %v28
  %v42 = vunpack.c.l.b16 %v29
  %v43 = vpack.c.b16 %v40, %v39
  %v44 = vpack.c.b16 %v42, %v41
  %vm47 = vcmask 261120
  %v49 = vsel %vm47, %v34, 0
  %51 = vmatprep.subr.bf16.mxu0 0
  %52 = vmatpush1.bf16.msra.mxu0 %v43
  %53 = vmatprep.subr.bf16.mxu0 0
  %54 = vmatpush1.bf16.msra.mxu0 %v44
  %55 = vmatprep.subr.bf16.mxu0 0
  %56 = vmatpush1.bf16.msra.mxu0 0
  %57 = vmatprep.subr.bf16.mxu0 0
  %58 = vmatpush1.bf16.msra.mxu0 0
  %59 = vmatprep.subr.bf16.mxu0 0
  %60 = vmatpush1.bf16.msra.mxu0 0
  %61 = vmatprep.subr.bf16.mxu0 0
  %62 = vmatpush1.bf16.msra.mxu0 0
  %63 = vmatprep.subr.bf16.mxu0 0
  %64 = vmatpush1.bf16.msra.mxu0 0
  %65 = vmatprep.subr.bf16.mxu0 0
  %66 = vmatpush1.bf16.msra.mxu0 0
  %67 = vmatprep.subr.bf16.mxu0 0
  %68 = vmatpush1.bf16.msra.mxu0 0
  %69 = vmatprep.subr.bf16.mxu0 0
  %70 = vmatpush1.bf16.msra.mxu0 0
  %71 = vmatprep.subr.bf16.mxu0 0
  %72 = vmatpush1.bf16.msra.mxu0 0
  %73 = vmatprep.subr.bf16.mxu0 0
  %74 = vmatpush1.bf16.msra.mxu0 0
  %75 = vmatprep.subr.bf16.mxu0 0
  %76 = vmatpush1.bf16.msra.mxu0 0
  %77 = vmatprep.subr.bf16.mxu0 0
  %78 = vmatpush1.bf16.msra.mxu0 0
  %79 = vmatprep.subr.bf16.mxu0 0
  %80 = vmatpush1.bf16.msra.mxu0 0
  %81 = vmatprep.subr.bf16.mxu0 0
  %82 = vmatpush1.bf16.msra.mxu0 0
  %83 = vmatprep.mubr.bf16.mxu0 0
  %84 = vmatmul.mubr.bf16.gmra.mrb[0].mxu0 %v49
  %v85 = vpop.f32.mrb[0].mxu0
  %v86 = vadd.f32 0.0, %v85
  %v87 = vpop.f32.mrb[0].mxu0
  %v88 = vpop.f32.mrb[0].mxu0
  %v89 = vadd.f32 0.0, %v88
  %v90 = vpop.f32.mrb[0].mxu0
  %91 = vdwg.mxu0
  %v92 = vadd.f32 %v22, %v86
  %v93 = vadd.f32 %v23, %v89
  %94 = vst.msk [vmem:[#allocation2] sm:$0xff] %vm47, %v92
  %95 = vst.msk [vmem:[#allocation2 + $0x8] sm:$0xff] %vm47, %v93
  // Predicated region
  $region18: #{multi_head_attention_forward.5} parent=0 // pred_check
    %p96 = pneg %p15
  $region19: #{multi_head_attention_forward.5} parent=0 // pred_check_branch
    %98 = sbr.rel (%p96) target = $region21
  $region20: #{multi_head_attention_forward.5} parent=0 // pred_region
    %v99 = vld [vmem:[#allocation2] sm:$0xff]
    %v100 = vld [vmem:[#allocation2 + $0x8] sm:$0xff]
    %v101 = vld [vmem:[%s2] sm:$0x1]
    %v103 = vlaneseq
    %v104 = vshrl.u32 %v103, 7
    %v105 = vsub.s32 0, %v104
    %v106 = vrot.slane %v101, %v105
    %v108 = vadd.f32 %v99, %v106
    %v109 = vadd.f32 %v100, %v106
    %v110 = vpack.c.bf16 %v109, %v108
    %v112 = vunpack.c.l.b16 %v110
    %v113 = vunpack.c.h.b16 %v110
    %v114 = vpack.c.b16 %v112, %v112
    %v115 = vpack.c.b16 %v113, %v113
    %vm118 = vcmask 257024
    %119 = vst.msk [vmem:[%s3] sm:$0xf] %vm118, %v114
    %120 = vst.msk [vmem:[%s3 + $0x4] sm:$0xf] %vm118, %v115
  $region21: #{multi_head_attention_forward.5} parent=0 // pred_fallthru
    _
  // Predicated region
  $region22: #{multi_head_attention_forward.5} parent=0 // pred_check
    _
  $region23: #{multi_head_attention_forward.5} parent=0 // pred_check_branch
    %122 = sbr.rel (0) target = $region25
  $region24: #{multi_head_attention_forward.5} parent=0 // pred_region
    _
  $region25: #{multi_head_attention_forward.5} parent=0 // pred_fallthru
    _
  // Predicated region
  $region26: #{multi_head_attention_forward.5} parent=0 // pred_check
    _
  $region27: #{multi_head_attention_forward.5} parent=0 // pred_check_branch
    %124 = sbr.rel (0) target = $region29
  $region28: #{multi_head_attention_forward.5} parent=0 // pred_region
    _
  $region29: #{multi_head_attention_forward.5} parent=0 // pred_fallthru
    _

// kernel: multi_head_attention_forward.8
$region0: #{multi_head_attention_forward.8}
  #allocation0 [shape = 'u32[]', space=smem, size = 0x4, offset = 0x4, fixed_abs, tag = 'smem constant byte address 0x4 - core index']
  #allocation1 [shape = 'u32[144,128]{1,0:T(1,128)}', space=vmem, size = 0x12000, scoped, tag = 'internal scratch']
  #allocation2 [shape = 'f32[4,1,8]{2,1,0:T(1,128)}', space=vmem, size = 0x800, scoped, tag = 'scratch operand']
  #allocation3 [shape = 'f32[4,1,8]{2,1,0:T(1,128)}', space=vmem, size = 0x800, scoped, tag = 'scratch operand']
  #allocation4 [shape = 'f32[4,8,8]{2,1,0:T(8,128)}', space=vmem, size = 0x4000, scoped, tag = 'scratch operand']
  %s0 = inlined_call_operand.vmem [shape: bf16[8,8,8], index: 0, kind: input, shape index: {}]
  %s1 = inlined_call_operand.vmem [shape: bf16[8,8,8], index: 1, kind: input, shape index: {}]
  %s2 = inlined_call_operand.vmem [shape: bf16[8,8,8], index: 2, kind: input, shape index: {}]
  %s3 = inlined_call_operand.vmem [shape: bf16[8,8,8], index: 3, kind: output, shape index: {}]
  %s4 = sld [smem:[#allocation0]]
  $region53: #{multi_head_attention_forward.8} parent=0
    _
  %s6 = ssub.s32 1, %s4
  %s7 = scalar_select 0, %s6, %s4
  loop: start=0, step=1, limit=4
  $region2: #{multi_head_attention_forward.8} parent=0 // loop_pre_header
    _
  $region3: #{multi_head_attention_forward.8} parent=0 // loop_header
    %s9 = sphi 0, %s13
    %p10 = scmp.ge.s32.totalorder %s9, 4
    %s16 = sphi 0, %s35
    %s17 = sphi 0, %s31
    %s18 = sphi 0, %s27
    %s19 = sphi 0, %s16
    %s20 = sphi 0, %s17
    %s21 = sphi 0, %s18
    %s22 = sphi 0, %s19
    %s23 = sphi 0, %s20
    %s24 = sphi 0, %s21
    %s40 = sphi 0, %s42
    %s43 = sphi 0, %s40
    %s44 = sphi 0, %s43
    %s60 = sphi 0, %s44
    %s68 = sphi 0, %s70
    %s71 = sphi 0, %s68
    %s72 = sphi 0, %s71
    %s88 = sphi 0, %s72
    %s96 = sphi 0, %s98
    %s99 = sphi 0, %s96
    %s100 = sphi 0, %s99
    %s116 = sphi 0, %s100
    %s124 = sphi 0, %s126
    %s127 = sphi 0, %s124
    %s128 = sphi 0, %s127
    %s144 = sphi 0, %s128
  $region4: #{multi_head_attention_forward.8} parent=0 // loop_header_branch
    %12 = sbr.rel (%p10) target = $region8
  $region5: #{multi_head_attention_forward.8} parent=0 // loop_body
    %s14 = ssub.s32 %s9, 1
    %s15 = ssub.s32 %s9, 2
    %s25 = sadd.s32 1, %s18
    %p26 = scmp.ge.s32.totalorder %s25, 1
    %s27 = scalar_select %p26, 0, %s25
    %s28 = sadd.s32 1, %s17
    %s29 = scalar_select %p26, %s28, %s17
    %p30 = scmp.ge.s32.totalorder %s29, 1
    %s31 = scalar_select %p30, 0, %s29
    %s32 = sadd.s32 1, %s16
    %s33 = scalar_select %p30, %s32, %s16
    %p34 = scmp.ge.s32.totalorder %s33, 2
    %s35 = scalar_select %p34, 0, %s33
    %s36 = ssub.s32 %s16, %s35
    %s37 = ssub.s32 %s17, %s31
    %s38 = sor.u32 %s36, %s37
    %p39 = scmp.eq.s32.totalorder %s38, 0
    %s41 = sadd.s32 %s40, 1
    %s42 = scalar_select %p39, %s40, %s41
    %p45 = pneg %p39
    %p46 = scmp.eq.s32.totalorder %s9, 1
    %p47 = por %p45, %p46
    %p48 = scmp.ne.s32.totalorder %s40, %s43
    %p49 = scmp.eq.s32.totalorder %s9, 0
    %p50 = por %p48, %p49
    %p51 = scmp.ne.s32.totalorder %s40, %s43
    %p52 = scmp.eq.s32.totalorder %s14, 1
    %p53 = por %p51, %p52
    %p54 = scmp.ne.s32.totalorder %s43, %s44
    %p55 = scmp.eq.s32.totalorder %s14, 0
    %p56 = por %p54, %p55
    %p57 = scmp.ne.s32.totalorder %s43, %s44
    %p58 = scmp.eq.s32.totalorder %s15, 1
    %p59 = por %p57, %p58
    %p61 = scmp.ne.s32.totalorder %s44, %s60
    %p62 = scmp.eq.s32.totalorder %s15, 0
    %p63 = por %p61, %p62
    %s64 = ssub.s32 %s16, %s35
    %s65 = ssub.s32 %s18, %s27
    %s66 = sor.u32 %s64, %s65
    %p67 = scmp.eq.s32.totalorder %s66, 0
    %s69 = sadd.s32 %s68, 1
    %s70 = scalar_select %p67, %s68, %s69
    %p73 = pneg %p67
    %p74 = scmp.eq.s32.totalorder %s9, 1
    %p75 = por %p73, %p74
    %p76 = scmp.ne.s32.totalorder %s68, %s71
    %p77 = scmp.eq.s32.totalorder %s9, 0
    %p78 = por %p76, %p77
    %p79 = scmp.ne.s32.totalorder %s68, %s71
    %p80 = scmp.eq.s32.totalorder %s14, 1
    %p81 = por %p79, %p80
    %p82 = scmp.ne.s32.totalorder %s71, %s72
    %p83 = scmp.eq.s32.totalorder %s14, 0
    %p84 = por %p82, %p83
    %p85 = scmp.ne.s32.totalorder %s71, %s72
    %p86 = scmp.eq.s32.totalorder %s15, 1
    %p87 = por %p85, %p86
    %p89 = scmp.ne.s32.totalorder %s72, %s88
    %p90 = scmp.eq.s32.totalorder %s15, 0
    %p91 = por %p89, %p90
    %s92 = ssub.s32 %s16, %s35
    %s93 = ssub.s32 %s18, %s27
    %s94 = sor.u32 %s92, %s93
    %p95 = scmp.eq.s32.totalorder %s94, 0
    %s97 = sadd.s32 %s96, 1
    %s98 = scalar_select %p95, %s96, %s97
    %p101 = pneg %p95
    %p102 = scmp.eq.s32.totalorder %s9, 1
    %p103 = por %p101, %p102
    %p104 = scmp.ne.s32.totalorder %s96, %s99
    %p105 = scmp.eq.s32.totalorder %s9, 0
    %p106 = por %p104, %p105
    %p107 = scmp.ne.s32.totalorder %s96, %s99
    %p108 = scmp.eq.s32.totalorder %s14, 1
    %p109 = por %p107, %p108
    %p110 = scmp.ne.s32.totalorder %s99, %s100
    %p111 = scmp.eq.s32.totalorder %s14, 0
    %p112 = por %p110, %p111
    %p113 = scmp.ne.s32.totalorder %s99, %s100
    %p114 = scmp.eq.s32.totalorder %s15, 1
    %p115 = por %p113, %p114
    %p117 = scmp.ne.s32.totalorder %s100, %s116
    %p118 = scmp.eq.s32.totalorder %s15, 0
    %p119 = por %p117, %p118
    %s120 = ssub.s32 %s16, %s35
    %s121 = ssub.s32 %s17, %s31
    %s122 = sor.u32 %s120, %s121
    %p123 = scmp.eq.s32.totalorder %s122, 0
    %s125 = sadd.s32 %s124, 1
    %s126 = scalar_select %p123, %s124, %s125
    %p129 = pneg %p123
    %p130 = scmp.eq.s32.totalorder %s9, 1
    %p131 = por %p129, %p130
    %p132 = scmp.ne.s32.totalorder %s124, %s127
    %p133 = scmp.eq.s32.totalorder %s9, 0
    %p134 = por %p132, %p133
    %p135 = scmp.ne.s32.totalorder %s124, %s127
    %p136 = scmp.eq.s32.totalorder %s14, 1
    %p137 = por %p135, %p136
    %p138 = scmp.ne.s32.totalorder %s127, %s128
    %p139 = scmp.eq.s32.totalorder %s14, 0
    %p140 = por %p138, %p139
    %p141 = scmp.ne.s32.totalorder %s127, %s128
    %p142 = scmp.eq.s32.totalorder %s15, 1
    %p143 = por %p141, %p142
    %p145 = scmp.ne.s32.totalorder %s128, %s144
    %p146 = scmp.eq.s32.totalorder %s15, 0
    %p147 = por %p145, %p146
    %p148 = scmp.le.s32.totalorder 1, %s9
    %p149 = scmp.lt.s32.totalorder %s9, 3
    %p150 = pnand %p148, %p149
    %p151 = pneg %p150
    // Predicated region
    $region9: #{multi_head_attention_forward.8} parent=5 // pred_check
      _
    $region10: #{multi_head_attention_forward.8} parent=5 // pred_check_branch
      %153 = sbr.rel (%p150) target = $region12
    $region11: #{multi_head_attention_forward.8} parent=5 // pred_region
      %s154 = ssub.s32 %s9, 1
    $region12: #{multi_head_attention_forward.8} parent=5 // pred_fallthru
      _
    %p155 = scmp.lt.s32.totalorder %s9, 2
    // Predicated region
    $region13: #{multi_head_attention_forward.8} parent=5 // pred_check
      %p156 = pneg %p155
    $region14: #{multi_head_attention_forward.8} parent=5 // pred_check_branch
      %158 = sbr.rel (%p156) target = $region16
    $region15: #{multi_head_attention_forward.8} parent=5 // pred_region
      // Predicated region
      $region17: #{multi_head_attention_forward.8} parent=15 // pred_check
        %p159 = pneg %p50
      $region18: #{multi_head_attention_forward.8} parent=15 // pred_check_branch
        %161 = sbr.rel (%p159) target = $region20
      $region19: #{multi_head_attention_forward.8} parent=15 // pred_region
        %s162 = smul.u32 4, %s16
        %p163 = scmp.lt.s32.totalorder %s162, 7
        %s164 = scalar_select %p163, %s162, 7
        %p165 = scmp.lt.s32.totalorder %s17, 0
        %s166 = scalar_select %p165, %s17, 0
        %s167 = sadd.s32 %s166, %s164
        %s168 = smul.addr %s167, 4
        %s169 = scalar_lea.vmem %s0, %s168
        %s170 = smul.u32 4, %s16
      $region20: #{multi_head_attention_forward.8} parent=15 // pred_fallthru
        _
      // Predicated region
      $region21: #{multi_head_attention_forward.8} parent=15 // pred_check
        %p171 = pneg %p78
      $region22: #{multi_head_attention_forward.8} parent=15 // pred_check_branch
        %173 = sbr.rel (%p171) target = $region24
      $region23: #{multi_head_attention_forward.8} parent=15 // pred_region
        %s174 = smul.u32 4, %s16
        %p175 = scmp.lt.s32.totalorder %s174, 7
        %s176 = scalar_select %p175, %s174, 7
        %p177 = scmp.lt.s32.totalorder %s18, 0
        %s178 = scalar_select %p177, %s18, 0
        %s179 = sadd.s32 %s178, %s176
        %s180 = smul.addr %s179, 4
        %s181 = scalar_lea.vmem %s1, %s180
        %s182 = smul.u32 4, %s16
      $region24: #{multi_head_attention_forward.8} parent=15 // pred_fallthru
        _
      // Predicated region
      $region25: #{multi_head_attention_forward.8} parent=15 // pred_check
        %p183 = pneg %p106
      $region26: #{multi_head_attention_forward.8} parent=15 // pred_check_branch
        %185 = sbr.rel (%p183) target = $region28
      $region27: #{multi_head_attention_forward.8} parent=15 // pred_region
        %s186 = smul.u32 4, %s16
        %p187 = scmp.lt.s32.totalorder %s186, 7
        %s188 = scalar_select %p187, %s186, 7
        %p189 = scmp.lt.s32.totalorder %s18, 0
        %s190 = scalar_select %p189, %s18, 0
        %s191 = sadd.s32 %s190, %s188
        %s192 = smul.addr %s191, 4
        %s193 = scalar_lea.vmem %s2, %s192
        %s194 = smul.u32 4, %s16
      $region28: #{multi_head_attention_forward.8} parent=15 // pred_fallthru
        _
    $region16: #{multi_head_attention_forward.8} parent=5 // pred_fallthru
      _
    %p195 = scmp.le.s32.totalorder 1, %s9
    %p196 = scmp.lt.s32.totalorder %s9, 3
    %p197 = pnand %p195, %p196
    %p198 = pneg %p197
    // Predicated region
    $region29: #{multi_head_attention_forward.8} parent=5 // pred_check
      _
    $region30: #{multi_head_attention_forward.8} parent=5 // pred_check_branch
      %200 = sbr.rel (%p197) target = $region32
    $region31: #{multi_head_attention_forward.8} parent=5 // pred_region
      %s201 = ssub.s32 %s9, 1
      %s202 = smul.u32 4, %s19
      %p203 = scmp.lt.s32.totalorder %s202, 7
      %s204 = scalar_select %p203, %s202, 7
      %p205 = scmp.lt.s32.totalorder %s20, 0
      %s206 = scalar_select %p205, %s20, 0
      %s207 = sadd.s32 %s206, %s204
      %s208 = smul.addr %s207, 4
      %s209 = scalar_lea.vmem %s0, %s208
      %p210 = pneg %p56
      %p211 = pneg %p53
      %s212 = smul.u32 4, %s19
      %p213 = scmp.lt.s32.totalorder %s212, 7
      %s214 = scalar_select %p213, %s212, 7
      %p215 = scmp.lt.s32.totalorder %s21, 0
      %s216 = scalar_select %p215, %s21, 0
      %s217 = sadd.s32 %s216, %s214
      %s218 = smul.addr %s217, 4
      %s219 = scalar_lea.vmem %s1, %s218
      %p220 = pneg %p84
      %p221 = pneg %p81
      %s222 = smul.u32 4, %s19
      %p223 = scmp.lt.s32.totalorder %s222, 7
      %s224 = scalar_select %p223, %s222, 7
      %p225 = scmp.lt.s32.totalorder %s21, 0
      %s226 = scalar_select %p225, %s21, 0
      %s227 = sadd.s32 %s226, %s224
      %s228 = smul.addr %s227, 4
      %s229 = scalar_lea.vmem %s2, %s228
      %p230 = pneg %p112
      %p231 = pneg %p109
      %p232 = pneg %p140
      %p233 = pneg %p137
      %s234 = smul.u32 4, %s19
      %p235 = scmp.lt.s32.totalorder %s234, 7
      %s236 = scalar_select %p235, %s234, 7
      %p237 = scmp.lt.s32.totalorder %s20, 0
      %s238 = scalar_select %p237, %s20, 0
      %s239 = sadd.s32 %s238, %s236
      %s240 = smul.addr %s239, 4
      %s241 = scalar_lea.vmem %s3, %s240
      %s242 = smul.u32 4, %s19
      %p243 = scmp.lt.s32.totalorder %s242, 7
      %s244 = scalar_select %p243, %s242, 7
      %p245 = scmp.lt.s32.totalorder %s20, 0
      %s246 = scalar_select %p245, %s20, 0
      %s247 = sadd.s32 %s246, %s244
      %s248 = smul.addr %s247, 4
      %s249 = scalar_lea.vmem %s0, %s248
      %s250 = smul.u32 4, %s19
      %s251 = smul.u32 4, %s19
      %p252 = scmp.lt.s32.totalorder %s251, 7
      %s253 = scalar_select %p252, %s251, 7
      %p254 = scmp.lt.s32.totalorder %s21, 0
      %s255 = scalar_select %p254, %s21, 0
      %s256 = sadd.s32 %s255, %s253
      %s257 = smul.addr %s256, 4
      %s258 = scalar_lea.vmem %s1, %s257
      %s259 = smul.u32 4, %s19
      %s260 = smul.u32 4, %s19
      %p261 = scmp.lt.s32.totalorder %s260, 7
      %s262 = scalar_select %p261, %s260, 7
      %p263 = scmp.lt.s32.totalorder %s21, 0
      %s264 = scalar_select %p263, %s21, 0
      %s265 = sadd.s32 %s264, %s262
      %s266 = smul.addr %s265, 4
      %s267 = scalar_lea.vmem %s2, %s266
      %s268 = smul.u32 4, %s19
      %s269 = smul.u32 4, %s19
      %p270 = scmp.lt.s32.totalorder %s269, 7
      %s271 = scalar_select %p270, %s269, 7
      %p272 = scmp.lt.s32.totalorder %s20, 0
      %s273 = scalar_select %p272, %s20, 0
      %s274 = sadd.s32 %s273, %s271
      %s275 = smul.addr %s274, 4
      %s276 = scalar_lea.vmem %s3, %s275
      %s277 = smul.u32 4, %s19
      %p279 = scmp.eq.s32.totalorder %s21, 0
      // Predicated region
      $region33: #{multi_head_attention_forward.8} parent=31 // pred_check
        %p280 = pneg %p279
      $region34: #{multi_head_attention_forward.8} parent=31 // pred_check_branch
        %282 = sbr.rel (%p280) target = $region36
      $region35: #{multi_head_attention_forward.8} parent=31 // pred_region
        %vm283 = vcmask 57344
        %284 = vst.msk [vmem:[#allocation2] sm:$0x1] %vm283, -inf
        %285 = vst.msk [vmem:[#allocation2 + $0x1] sm:$0x1] %vm283, -inf
        %286 = vst.msk [vmem:[#allocation2 + $0x2] sm:$0x1] %vm283, -inf
        %287 = vst.msk [vmem:[#allocation2 + $0x3] sm:$0x1] %vm283, -inf
        %288 = vst.msk [vmem:[#allocation3] sm:$0x1] %vm283, 0.0
        %289 = vst.msk [vmem:[#allocation3 + $0x1] sm:$0x1] %vm283, 0.0
        %290 = vst.msk [vmem:[#allocation3 + $0x2] sm:$0x1] %vm283, 0.0
        %291 = vst.msk [vmem:[#allocation3 + $0x3] sm:$0x1] %vm283, 0.0
        %vm292 = vcmask 64512
        %293 = vst.msk [vmem:[#allocation4] sm:$0xff] %vm292, 0.0
        %294 = vst.msk [vmem:[#allocation4 + $0x8] sm:$0xff] %vm292, 0.0
        %295 = vst.msk [vmem:[#allocation4 + $0x10] sm:$0xff] %vm292, 0.0
        %296 = vst.msk [vmem:[#allocation4 + $0x18] sm:$0xff] %vm292, 0.0
      $region36: #{multi_head_attention_forward.8} parent=31 // pred_fallthru
        _
      %v297 = vld [vmem:[%s258] sm:$0xf]
      %v298 = vld [vmem:[%s258 + $0x4] sm:$0xf]
      %v299 = vld [vmem:[%s258 + $0x8] sm:$0xf]
      %v300 = vld [vmem:[%s258 + $0xc] sm:$0xf]
      %v301 = vld [vmem:[%s249] sm:$0xf]
      %v302 = vld [vmem:[%s249 + $0x4] sm:$0xf]
      %v303 = vld [vmem:[%s249 + $0x8] sm:$0xf]
      %v304 = vld [vmem:[%s249 + $0xc] sm:$0xf]
      %vm305 = vcmask 64512
      %v307 = vsel %vm305, %v297, 0
      %v310 = vsel %vm305, %v301, 0
      %312 = vmatprep.subr.bf16.mxu0 0
      %313 = vmatpush1.bf16.xpose.msra.mxu0 %v310
      %314 = vmatprep.subr.bf16.mxu0 0
      %315 = vmatpush1.bf16.xpose.msra.mxu0 0
      %316 = vmatprep.subr.bf16.mxu0 0
      %317 = vmatpush1.bf16.xpose.msra.mxu0 0
      %318 = vmatprep.subr.bf16.mxu0 0
      %319 = vmatpush1.bf16.xpose.msra.mxu0 0
      %320 = vmatprep.subr.bf16.mxu0 0
      %321 = vmatpush1.bf16.xpose.msra.mxu0 0
      %322 = vmatprep.subr.bf16.mxu0 0
      %323 = vmatpush1.bf16.xpose.msra.mxu0 0
      %324 = vmatprep.subr.bf16.mxu0 0
      %325 = vmatpush1.bf16.xpose.msra.mxu0 0
      %326 = vmatprep.subr.bf16.mxu0 0
      %327 = vmatpush1.bf16.xpose.msra.mxu0 0
      %328 = vmatprep.subr.bf16.mxu0 0
      %329 = vmatpush1.bf16.xpose.msra.mxu0 0
      %330 = vmatprep.subr.bf16.mxu0 0
      %331 = vmatpush1.bf16.xpose.msra.mxu0 0
      %332 = vmatprep.subr.bf16.mxu0 0
      %333 = vmatpush1.bf16.xpose.msra.mxu0 0
      %334 = vmatprep.subr.bf16.mxu0 0
      %335 = vmatpush1.bf16.xpose.msra.mxu0 0
      %336 = vmatprep.subr.bf16.mxu0 0
      %337 = vmatpush1.bf16.xpose.msra.mxu0 0
      %338 = vmatprep.subr.bf16.mxu0 0
      %339 = vmatpush1.bf16.xpose.msra.mxu0 0
      %340 = vmatprep.subr.bf16.mxu0 0
      %341 = vmatpush1.bf16.xpose.msra.mxu0 0
      %342 = vmatprep.subr.bf16.mxu0 0
      %343 = vmatpush1.bf16.xpose.msra.mxu0 0
      %344 = vmatprep.mubr.bf16.mxu0 0
      %345 = vmatmul.mubr.bf16.gmra.mrb[0].mxu0 %v307
      %v346 = vpop.f32.mrb[0].mxu0
      %v347 = vadd.f32 0.0, %v346
      %v348 = vpop.f32.mrb[0].mxu0
      %v349 = vpop.f32.mrb[0].mxu0
      %v350 = vpop.f32.mrb[0].mxu0
      %351 = vdwg.mxu0
      %v353 = vsel %vm305, %v298, 0
      %v356 = vsel %vm305, %v302, 0
      %358 = vmatprep.subr.bf16.mxu0 0
      %359 = vmatpush1.bf16.xpose.msra.mxu0 %v356
      %360 = vmatprep.subr.bf16.mxu0 0
      %361 = vmatpush1.bf16.xpose.msra.mxu0 0
      %362 = vmatprep.subr.bf16.mxu0 0
      %363 = vmatpush1.bf16.xpose.msra.mxu0 0
      %364 = vmatprep.subr.bf16.mxu0 0
      %365 = vmatpush1.bf16.xpose.msra.mxu0 0
      %366 = vmatprep.subr.bf16.mxu0 0
      %367 = vmatpush1.bf16.xpose.msra.mxu0 0
      %368 = vmatprep.subr.bf16.mxu0 0
      %369 = vmatpush1.bf16.xpose.msra.mxu0 0
      %370 = vmatprep.subr.bf16.mxu0 0
      %371 = vmatpush1.bf16.xpose.msra.mxu0 0
      %372 = vmatprep.subr.bf16.mxu0 0
      %373 = vmatpush1.bf16.xpose.msra.mxu0 0
      %374 = vmatprep.subr.bf16.mxu0 0
      %375 = vmatpush1.bf16.xpose.msra.mxu0 0
      %376 = vmatprep.subr.bf16.mxu0 0
      %377 = vmatpush1.bf16.xpose.msra.mxu0 0
      %378 = vmatprep.subr.bf16.mxu0 0
      %379 = vmatpush1.bf16.xpose.msra.mxu0 0
      %380 = vmatprep.subr.bf16.mxu0 0
      %381 = vmatpush1.bf16.xpose.msra.mxu0 0
      %382 = vmatprep.subr.bf16.mxu0 0
      %383 = vmatpush1.bf16.xpose.msra.mxu0 0
      %384 = vmatprep.subr.bf16.mxu0 0
      %385 = vmatpush1.bf16.xpose.msra.mxu0 0
      %386 = vmatprep.subr.bf16.mxu0 0
      %387 = vmatpush1.bf16.xpose.msra.mxu0 0
      %388 = vmatprep.subr.bf16.mxu0 0
      %389 = vmatpush1.bf16.xpose.msra.mxu0 0
      %390 = vmatprep.mubr.bf16.mxu0 0
      %391 = vmatmul.mubr.bf16.gmra.mrb[0].mxu0 %v353
      %v392 = vpop.f32.mrb[0].mxu0
      %v393 = vadd.f32 0.0, %v392
      %v394 = vpop.f32.mrb[0].mxu0
      %v395 = vpop.f32.mrb[0].mxu0
      %v396 = vpop.f32.mrb[0].mxu0
      %397 = vdwg.mxu0
      %v399 = vsel %vm305, %v299, 0
      %v402 = vsel %vm305, %v303, 0
      %404 = vmatprep.subr.bf16.mxu0 0
      %405 = vmatpush1.bf16.xpose.msra.mxu0 %v402
      %406 = vmatprep.subr.bf16.mxu0 0
      %407 = vmatpush1.bf16.xpose.msra.mxu0 0
      %408 = vmatprep.subr.bf16.mxu0 0
      %409 = vmatpush1.bf16.xpose.msra.mxu0 0
      %410 = vmatprep.subr.bf16.mxu0 0
      %411 = vmatpush1.bf16.xpose.msra.mxu0 0
      %412 = vmatprep.subr.bf16.mxu0 0
      %413 = vmatpush1.bf16.xpose.msra.mxu0 0
      %414 = vmatprep.subr.bf16.mxu0 0
      %415 = vmatpush1.bf16.xpose.msra.mxu0 0
      %416 = vmatprep.subr.bf16.mxu0 0
      %417 = vmatpush1.bf16.xpose.msra.mxu0 0
      %418 = vmatprep.subr.bf16.mxu0 0
      %419 = vmatpush1.bf16.xpose.msra.mxu0 0
      %420 = vmatprep.subr.bf16.mxu0 0
      %421 = vmatpush1.bf16.xpose.msra.mxu0 0
      %422 = vmatprep.subr.bf16.mxu0 0
      %423 = vmatpush1.bf16.xpose.msra.mxu0 0
      %424 = vmatprep.subr.bf16.mxu0 0
      %425 = vmatpush1.bf16.xpose.msra.mxu0 0
      %426 = vmatprep.subr.bf16.mxu0 0
      %427 = vmatpush1.bf16.xpose.msra.mxu0 0
      %428 = vmatprep.subr.bf16.mxu0 0
      %429 = vmatpush1.bf16.xpose.msra.mxu0 0
      %430 = vmatprep.subr.bf16.mxu0 0
      %431 = vmatpush1.bf16.xpose.msra.mxu0 0
      %432 = vmatprep.subr.bf16.mxu0 0
      %433 = vmatpush1.bf16.xpose.msra.mxu0 0
      %434 = vmatprep.subr.bf16.mxu0 0
      %435 = vmatpush1.bf16.xpose.msra.mxu0 0
      %436 = vmatprep.mubr.bf16.mxu0 0
      %437 = vmatmul.mubr.bf16.gmra.mrb[0].mxu0 %v399
      %v438 = vpop.f32.mrb[0].mxu0
      %v439 = vadd.f32 0.0, %v438
      %v440 = vpop.f32.mrb[0].mxu0
      %v441 = vpop.f32.mrb[0].mxu0
      %v442 = vpop.f32.mrb[0].mxu0
      %443 = vdwg.mxu0
      %v445 = vsel %vm305, %v300, 0
      %v448 = vsel %vm305, %v304, 0
      %450 = vmatprep.subr.bf16.mxu0 0
      %451 = vmatpush1.bf16.xpose.msra.mxu0 %v448
      %452 = vmatprep.subr.bf16.mxu0 0
      %453 = vmatpush1.bf16.xpose.msra.mxu0 0
      %454 = vmatprep.subr.bf16.mxu0 0
      %455 = vmatpush1.bf16.xpose.msra.mxu0 0
      %456 = vmatprep.subr.bf16.mxu0 0
      %457 = vmatpush1.bf16.xpose.msra.mxu0 0
      %458 = vmatprep.subr.bf16.mxu0 0
      %459 = vmatpush1.bf16.xpose.msra.mxu0 0
      %460 = vmatprep.subr.bf16.mxu0 0
      %461 = vmatpush1.bf16.xpose.msra.mxu0 0
      %462 = vmatprep.subr.bf16.mxu0 0
      %463 = vmatpush1.bf16.xpose.msra.mxu0 0
      %464 = vmatprep.subr.bf16.mxu0 0
      %465 = vmatpush1.bf16.xpose.msra.mxu0 0
      %466 = vmatprep.subr.bf16.mxu0 0
      %467 = vmatpush1.bf16.xpose.msra.mxu0 0
      %468 = vmatprep.subr.bf16.mxu0 0
      %469 = vmatpush1.bf16.xpose.msra.mxu0 0
      %470 = vmatprep.subr.bf16.mxu0 0
      %471 = vmatpush1.bf16.xpose.msra.mxu0 0
      %472 = vmatprep.subr.bf16.mxu0 0
      %473 = vmatpush1.bf16.xpose.msra.mxu0 0
      %474 = vmatprep.subr.bf16.mxu0 0
      %475 = vmatpush1.bf16.xpose.msra.mxu0 0
      %476 = vmatprep.subr.bf16.mxu0 0
      %477 = vmatpush1.bf16.xpose.msra.mxu0 0
      %478 = vmatprep.subr.bf16.mxu0 0
      %479 = vmatpush1.bf16.xpose.msra.mxu0 0
      %480 = vmatprep.subr.bf16.mxu0 0
      %481 = vmatpush1.bf16.xpose.msra.mxu0 0
      %482 = vmatprep.mubr.bf16.mxu0 0
      %483 = vmatmul.mubr.bf16.gmra.mrb[0].mxu0 %v445
      %v484 = vpop.f32.mrb[0].mxu0
      %v485 = vadd.f32 0.0, %v484
      %v486 = vpop.f32.mrb[0].mxu0
      %v487 = vpop.f32.mrb[0].mxu0
      %v488 = vpop.f32.mrb[0].mxu0
      %489 = vdwg.mxu0
      %v490 = vld [vmem:[#allocation2] sm:$0x1]
      %v491 = vld [vmem:[#allocation2 + $0x1] sm:$0x1]
      %v492 = vld [vmem:[#allocation2 + $0x2] sm:$0x1]
      %v493 = vld [vmem:[#allocation2 + $0x3] sm:$0x1]
      %v494 = vsel %vm305, %v347, -inf
      %v495 = vrot.slane %v494, 4
      %v496 = vmax.f32 %v494, %v495
      %v497 = vrot.slane %v496, 2
      %v498 = vmax.f32 %v496, %v497
      %v499 = vrot.slane %v498, 1
      %v500 = vmax.f32 %v498, %v499
      %v501 = vsel %vm305, %v393, -inf
      %v502 = vrot.slane %v501, 4
      %v503 = vmax.f32 %v501, %v502
      %v504 = vrot.slane %v503, 2
      %v505 = vmax.f32 %v503, %v504
      %v506 = vrot.slane %v505, 1
      %v507 = vmax.f32 %v505, %v506
      %v508 = vsel %vm305, %v439, -inf
      %v509 = vrot.slane %v508, 4
      %v510 = vmax.f32 %v508, %v509
      %v511 = vrot.slane %v510, 2
      %v512 = vmax.f32 %v510, %v511
      %v513 = vrot.slane %v512, 1
      %v514 = vmax.f32 %v512, %v513
      %v515 = vsel %vm305, %v485, -inf
      %v516 = vrot.slane %v515, 4
      %v517 = vmax.f32 %v515, %v516
      %v518 = vrot.slane %v517, 2
      %v519 = vmax.f32 %v517, %v518
      %v520 = vrot.slane %v519, 1
      %v521 = vmax.f32 %v519, %v520
      %v522 = vmax.f32 %v490, %v500
      %v523 = vmax.f32 %v491, %v507
      %v524 = vmax.f32 %v492, %v514
      %v525 = vmax.f32 %v493, %v521
      %v526 = vsub.f32 %v490, %v522
      %v527 = vsub.f32 %v491, %v523
      %v528 = vsub.f32 %v492, %v524
      %v529 = vsub.f32 %v493, %v525
      %v530 = vmul.f32 %v526, 1.442695
      %v531 = vpow.pop %v530
      %v532 = vmul.f32 %v527, 1.442695
      %v533 = vpow.pop %v532
      %v534 = vmul.f32 %v528, 1.442695
      %v535 = vpow.pop %v534
      %v536 = vmul.f32 %v529, 1.442695
      %v537 = vpow.pop %v536
      %v542 = vlaneseq
      %v543 = vshrl.u32 %v542, 7
      %v544 = vsub.s32 0, %v543
      %v545 = vrot.slane %v522, %v544
      %v546 = vlaneseq
      %v547 = vshrl.u32 %v546, 7
      %v548 = vsub.s32 0, %v547
      %v549 = vrot.slane %v523, %v548
      %v550 = vlaneseq
      %v551 = vshrl.u32 %v550, 7
      %v552 = vsub.s32 0, %v551
      %v553 = vrot.slane %v524, %v552
      %v554 = vlaneseq
      %v555 = vshrl.u32 %v554, 7
      %v556 = vsub.s32 0, %v555
      %v557 = vrot.slane %v525, %v556
      %v562 = vsub.f32 %v347, %v545
      %v563 = vsub.f32 %v393, %v549
      %v564 = vsub.f32 %v439, %v553
      %v565 = vsub.f32 %v485, %v557
      %v566 = vmul.f32 %v562, 1.442695
      %v567 = vpow.pop %v566
      %v568 = vmul.f32 %v563, 1.442695
      %v569 = vpow.pop %v568
      %v570 = vmul.f32 %v564, 1.442695
      %v571 = vpow.pop %v570
      %v572 = vmul.f32 %v565, 1.442695
      %v573 = vpow.pop %v572
      %v574 = vld [vmem:[#allocation3] sm:$0x1]
      %v575 = vld [vmem:[#allocation3 + $0x1] sm:$0x1]
      %v576 = vld [vmem:[#allocation3 + $0x2] sm:$0x1]
      %v577 = vld [vmem:[#allocation3 + $0x3] sm:$0x1]
      %v578 = vmul.f32 %v531, %v574
      %v579 = vmul.f32 %v533, %v575
      %v580 = vmul.f32 %v535, %v576
      %v581 = vmul.f32 %v537, %v577
      %v582 = vsel %vm305, %v567, 0.0
      %v583 = vrot.slane %v582, 4
      %v584 = vadd.f32 %v582, %v583
      %v585 = vrot.slane %v584, 2
      %v586 = vadd.f32 %v584, %v585
      %v587 = vrot.slane %v586, 1
      %v588 = vadd.f32 %v586, %v587
      %v589 = vsel %vm305, %v569, 0.0
      %v590 = vrot.slane %v589, 4
      %v591 = vadd.f32 %v589, %v590
      %v592 = vrot.slane %v591, 2
      %v593 = vadd.f32 %v591, %v592
      %v594 = vrot.slane %v593, 1
      %v595 = vadd.f32 %v593, %v594
      %v596 = vsel %vm305, %v571, 0.0
      %v597 = vrot.slane %v596, 4
      %v598 = vadd.f32 %v596, %v597
      %v599 = vrot.slane %v598, 2
      %v600 = vadd.f32 %v598, %v599
      %v601 = vrot.slane %v600, 1
      %v602 = vadd.f32 %v600, %v601
      %v603 = vsel %vm305, %v573, 0.0
      %v604 = vrot.slane %v603, 4
      %v605 = vadd.f32 %v603, %v604
      %v606 = vrot.slane %v605, 2
      %v607 = vadd.f32 %v605, %v606
      %v608 = vrot.slane %v607, 1
      %v609 = vadd.f32 %v607, %v608
      %v610 = vadd.f32 %v578, %v588
      %v611 = vadd.f32 %v579, %v595
      %v612 = vadd.f32 %v580, %v602
      %v613 = vadd.f32 %v581, %v609
      %vm614 = vcmask 57344
      %615 = vst.msk [vmem:[#allocation3] sm:$0x1] %vm614, %v610
      %616 = vst.msk [vmem:[#allocation3 + $0x1] sm:$0x1] %vm614, %v611
      %617 = vst.msk [vmem:[#allocation3 + $0x2] sm:$0x1] %vm614, %v612
      %618 = vst.msk [vmem:[#allocation3 + $0x3] sm:$0x1] %vm614, %v613
      %v619 = vld [vmem:[%s267] sm:$0xf]
      %v620 = vld [vmem:[%s267 + $0x4] sm:$0xf]
      %v621 = vld [vmem:[%s267 + $0x8] sm:$0xf]
      %v622 = vld [vmem:[%s267 + $0xc] sm:$0xf]
      %v623 = vpack.c.bf16 %v567, %v567
      %v624 = vpack.c.bf16 %v569, %v569
      %v625 = vpack.c.bf16 %v571, %v571
      %v626 = vpack.c.bf16 %v573, %v573
      %627 = vxpose.xlu0.c.b16.start [1/8] %v619, 128
      %628 = vxpose.xlu0.c.b16.cont [2/8] 0, 128
      %629 = vxpose.xlu0.c.b16.cont [3/8] 0, 128
      %630 = vxpose.xlu0.c.b16.cont [4/8] 0, 128
      %631 = vxpose.xlu0.c.b16.cont [5/8] 0, 128
      %632 = vxpose.xlu0.c.b16.cont [6/8] 0, 128
      %633 = vxpose.xlu0.c.b16.cont [7/8] 0, 128
      %634 = vxpose.xlu0.c.b16.end [8/8] 0, 128
      %v635 = vpop.trf.xlu0
      %v636 = vpop.trf.xlu0
      %v637 = vpop.trf.xlu0
      %v638 = vpop.trf.xlu0
      %v639 = vpop.trf.xlu0
      %v640 = vpop.trf.xlu0
      %v641 = vpop.trf.xlu0
      %v642 = vpop.trf.xlu0
      %v644 = vsel %vm305, %v635, 0
      %vm646 = vcmask 1043456
      %v648 = vsel %vm646, %v623, 0
      %650 = vmatprep.subr.bf16.mxu0 0
      %651 = vmatpush1.bf16.msra.mxu0 %v648
      %652 = vmatprep.subr.bf16.mxu0 0
      %653 = vmatpush1.bf16.msra.mxu0 0
      %654 = vmatprep.subr.bf16.mxu0 0
      %655 = vmatpush1.bf16.msra.mxu0 0
      %656 = vmatprep.subr.bf16.mxu0 0
      %657 = vmatpush1.bf16.msra.mxu0 0
      %658 = vmatprep.subr.bf16.mxu0 0
      %659 = vmatpush1.bf16.msra.mxu0 0
      %660 = vmatprep.subr.bf16.mxu0 0
      %661 = vmatpush1.bf16.msra.mxu0 0
      %662 = vmatprep.subr.bf16.mxu0 0
      %663 = vmatpush1.bf16.msra.mxu0 0
      %664 = vmatprep.subr.bf16.mxu0 0
      %665 = vmatpush1.bf16.msra.mxu0 0
      %666 = vmatprep.subr.bf16.mxu0 0
      %667 = vmatpush1.bf16.msra.mxu0 0
      %668 = vmatprep.subr.bf16.mxu0 0
      %669 = vmatpush1.bf16.msra.mxu0 0
      %670 = vmatprep.subr.bf16.mxu0 0
      %671 = vmatpush1.bf16.msra.mxu0 0
      %672 = vmatprep.subr.bf16.mxu0 0
      %673 = vmatpush1.bf16.msra.mxu0 0
      %674 = vmatprep.subr.bf16.mxu0 0
      %675 = vmatpush1.bf16.msra.mxu0 0
      %676 = vmatprep.subr.bf16.mxu0 0
      %677 = vmatpush1.bf16.msra.mxu0 0
      %678 = vmatprep.subr.bf16.mxu0 0
      %679 = vmatpush1.bf16.msra.mxu0 0
      %680 = vmatprep.subr.bf16.mxu0 0
      %681 = vmatpush1.bf16.msra.mxu0 0
      %682 = vmatprep.mubr.bf16.mxu0 0
      %683 = vmatmul.mubr.bf16.gmra.mrb[0].mxu0 %v644
      %v684 = vpop.f32.mrb[0].mxu0
      %v685 = vadd.f32 0.0, %v684
      %v686 = vpop.f32.mrb[0].mxu0
      %v687 = vpop.f32.mrb[0].mxu0
      %v688 = vpop.f32.mrb[0].mxu0
      %689 = vdwg.mxu0
      %690 = vxpose.xlu0.c.b16.start [1/8] %v620, 128
      %691 = vxpose.xlu0.c.b16.cont [2/8] 0, 128
      %692 = vxpose.xlu0.c.b16.cont [3/8] 0, 128
      %693 = vxpose.xlu0.c.b16.cont [4/8] 0, 128
      %694 = vxpose.xlu0.c.b16.cont [5/8] 0, 128
      %695 = vxpose.xlu0.c.b16.cont [6/8] 0, 128
      %696 = vxpose.xlu0.c.b16.cont [7/8] 0, 128
      %697 = vxpose.xlu0.c.b16.end [8/8] 0, 128
      %v698 = vpop.trf.xlu0
      %v699 = vpop.trf.xlu0
      %v700 = vpop.trf.xlu0
      %v701 = vpop.trf.xlu0
      %v702 = vpop.trf.xlu0
      %v703 = vpop.trf.xlu0
      %v704 = vpop.trf.xlu0
      %v705 = vpop.trf.xlu0
      %v707 = vsel %vm305, %v698, 0
      %v710 = vsel %vm646, %v624, 0
      %712 = vmatprep.subr.bf16.mxu0 0
      %713 = vmatpush1.bf16.msra.mxu0 %v710
      %714 = vmatprep.subr.bf16.mxu0 0
      %715 = vmatpush1.bf16.msra.mxu0 0
      %716 = vmatprep.subr.bf16.mxu0 0
      %717 = vmatpush1.bf16.msra.mxu0 0
      %718 = vmatprep.subr.bf16.mxu0 0
      %719 = vmatpush1.bf16.msra.mxu0 0
      %720 = vmatprep.subr.bf16.mxu0 0
      %721 = vmatpush1.bf16.msra.mxu0 0
      %722 = vmatprep.subr.bf16.mxu0 0
      %723 = vmatpush1.bf16.msra.mxu0 0
      %724 = vmatprep.subr.bf16.mxu0 0
      %725 = vmatpush1.bf16.msra.mxu0 0
      %726 = vmatprep.subr.bf16.mxu0 0
      %727 = vmatpush1.bf16.msra.mxu0 0
      %728 = vmatprep.subr.bf16.mxu0 0
      %729 = vmatpush1.bf16.msra.mxu0 0
      %730 = vmatprep.subr.bf16.mxu0 0
      %731 = vmatpush1.bf16.msra.mxu0 0
      %732 = vmatprep.subr.bf16.mxu0 0
      %733 = vmatpush1.bf16.msra.mxu0 0
      %734 = vmatprep.subr.bf16.mxu0 0
      %735 = vmatpush1.bf16.msra.mxu0 0
      %736 = vmatprep.subr.bf16.mxu0 0
      %737 = vmatpush1.bf16.msra.mxu0 0
      %738 = vmatprep.subr.bf16.mxu0 0
      %739 = vmatpush1.bf16.msra.mxu0 0
      %740 = vmatprep.subr.bf16.mxu0 0
      %741 = vmatpush1.bf16.msra.mxu0 0
      %742 = vmatprep.subr.bf16.mxu0 0
      %743 = vmatpush1.bf16.msra.mxu0 0
      %744 = vmatprep.mubr.bf16.mxu0 0
      %745 = vmatmul.mubr.bf16.gmra.mrb[0].mxu0 %v707
      %v746 = vpop.f32.mrb[0].mxu0
      %v747 = vadd.f32 0.0, %v746
      %v748 = vpop.f32.mrb[0].mxu0
      %v749 = vpop.f32.mrb[0].mxu0
      %v750 = vpop.f32.mrb[0].mxu0
      %751 = vdwg.mxu0
      %752 = vxpose.xlu0.c.b16.start [1/8] %v621, 128
      %753 = vxpose.xlu0.c.b16.cont [2/8] 0, 128
      %754 = vxpose.xlu0.c.b16.cont [3/8] 0, 128
      %755 = vxpose.xlu0.c.b16.cont [4/8] 0, 128
      %756 = vxpose.xlu0.c.b16.cont [5/8] 0, 128
      %757 = vxpose.xlu0.c.b16.cont [6/8] 0, 128
      %758 = vxpose.xlu0.c.b16.cont [7/8] 0, 128
      %759 = vxpose.xlu0.c.b16.end [8/8] 0, 128
      %v760 = vpop.trf.xlu0
      %v761 = vpop.trf.xlu0
      %v762 = vpop.trf.xlu0
      %v763 = vpop.trf.xlu0
      %v764 = vpop.trf.xlu0
      %v765 = vpop.trf.xlu0
      %v766 = vpop.trf.xlu0
      %v767 = vpop.trf.xlu0
      %v769 = vsel %vm305, %v760, 0
      %v772 = vsel %vm646, %v625, 0
      %774 = vmatprep.subr.bf16.mxu0 0
      %775 = vmatpush1.bf16.msra.mxu0 %v772
      %776 = vmatprep.subr.bf16.mxu0 0
      %777 = vmatpush1.bf16.msra.mxu0 0
      %778 = vmatprep.subr.bf16.mxu0 0
      %779 = vmatpush1.bf16.msra.mxu0 0
      %780 = vmatprep.subr.bf16.mxu0 0
      %781 = vmatpush1.bf16.msra.mxu0 0
      %782 = vmatprep.subr.bf16.mxu0 0
      %783 = vmatpush1.bf16.msra.mxu0 0
      %784 = vmatprep.subr.bf16.mxu0 0
      %785 = vmatpush1.bf16.msra.mxu0 0
      %786 = vmatprep.subr.bf16.mxu0 0
      %787 = vmatpush1.bf16.msra.mxu0 0
      %788 = vmatprep.subr.bf16.mxu0 0
      %789 = vmatpush1.bf16.msra.mxu0 0
      %790 = vmatprep.subr.bf16.mxu0 0
      %791 = vmatpush1.bf16.msra.mxu0 0
      %792 = vmatprep.subr.bf16.mxu0 0
      %793 = vmatpush1.bf16.msra.mxu0 0
      %794 = vmatprep.subr.bf16.mxu0 0
      %795 = vmatpush1.bf16.msra.mxu0 0
      %796 = vmatprep.subr.bf16.mxu0 0
      %797 = vmatpush1.bf16.msra.mxu0 0
      %798 = vmatprep.subr.bf16.mxu0 0
      %799 = vmatpush1.bf16.msra.mxu0 0
      %800 = vmatprep.subr.bf16.mxu0 0
      %801 = vmatpush1.bf16.msra.mxu0 0
      %802 = vmatprep.subr.bf16.mxu0 0
      %803 = vmatpush1.bf16.msra.mxu0 0
      %804 = vmatprep.subr.bf16.mxu0 0
      %805 = vmatpush1.bf16.msra.mxu0 0
      %806 = vmatprep.mubr.bf16.mxu0 0
      %807 = vmatmul.mubr.bf16.gmra.mrb[0].mxu0 %v769
      %v808 = vpop.f32.mrb[0].mxu0
      %v809 = vadd.f32 0.0, %v808
      %v810 = vpop.f32.mrb[0].mxu0
      %v811 = vpop.f32.mrb[0].mxu0
      %v812 = vpop.f32.mrb[0].mxu0
      %813 = vdwg.mxu0
      %814 = vxpose.xlu0.c.b16.start [1/8] %v622, 128
      %815 = vxpose.xlu0.c.b16.cont [2/8] 0, 128
      %816 = vxpose.xlu0.c.b16.cont [3/8] 0, 128
      %817 = vxpose.xlu0.c.b16.cont [4/8] 0, 128
      %818 = vxpose.xlu0.c.b16.cont [5/8] 0, 128
      %819 = vxpose.xlu0.c.b16.cont [6/8] 0, 128
      %820 = vxpose.xlu0.c.b16.cont [7/8] 0, 128
      %821 = vxpose.xlu0.c.b16.end [8/8] 0, 128
      %v822 = vpop.trf.xlu0
      %v823 = vpop.trf.xlu0
      %v824 = vpop.trf.xlu0
      %v825 = vpop.trf.xlu0
      %v826 = vpop.trf.xlu0
      %v827 = vpop.trf.xlu0
      %v828 = vpop.trf.xlu0
      %v829 = vpop.trf.xlu0
      %v831 = vsel %vm305, %v822, 0
      %v834 = vsel %vm646, %v626, 0
      %836 = vmatprep.subr.bf16.mxu0 0
      %837 = vmatpush1.bf16.msra.mxu0 %v834
      %838 = vmatprep.subr.bf16.mxu0 0
      %839 = vmatpush1.bf16.msra.mxu0 0
      %840 = vmatprep.subr.bf16.mxu0 0
      %841 = vmatpush1.bf16.msra.mxu0 0
      %842 = vmatprep.subr.bf16.mxu0 0
      %843 = vmatpush1.bf16.msra.mxu0 0
      %844 = vmatprep.subr.bf16.mxu0 0
      %845 = vmatpush1.bf16.msra.mxu0 0
      %846 = vmatprep.subr.bf16.mxu0 0
      %847 = vmatpush1.bf16.msra.mxu0 0
      %848 = vmatprep.subr.bf16.mxu0 0
      %849 = vmatpush1.bf16.msra.mxu0 0
      %850 = vmatprep.subr.bf16.mxu0 0
      %851 = vmatpush1.bf16.msra.mxu0 0
      %852 = vmatprep.subr.bf16.mxu0 0
      %853 = vmatpush1.bf16.msra.mxu0 0
      %854 = vmatprep.subr.bf16.mxu0 0
      %855 = vmatpush1.bf16.msra.mxu0 0
      %856 = vmatprep.subr.bf16.mxu0 0
      %857 = vmatpush1.bf16.msra.mxu0 0
      %858 = vmatprep.subr.bf16.mxu0 0
      %859 = vmatpush1.bf16.msra.mxu0 0
      %860 = vmatprep.subr.bf16.mxu0 0
      %861 = vmatpush1.bf16.msra.mxu0 0
      %862 = vmatprep.subr.bf16.mxu0 0
      %863 = vmatpush1.bf16.msra.mxu0 0
      %864 = vmatprep.subr.bf16.mxu0 0
      %865 = vmatpush1.bf16.msra.mxu0 0
      %866 = vmatprep.subr.bf16.mxu0 0
      %867 = vmatpush1.bf16.msra.mxu0 0
      %868 = vmatprep.mubr.bf16.mxu0 0
      %869 = vmatmul.mubr.bf16.gmra.mrb[0].mxu0 %v831
      %v870 = vpop.f32.mrb[0].mxu0
      %v871 = vadd.f32 0.0, %v870
      %v872 = vpop.f32.mrb[0].mxu0
      %v873 = vpop.f32.mrb[0].mxu0
      %v874 = vpop.f32.mrb[0].mxu0
      %875 = vdwg.mxu0
      %v876 = vld [vmem:[#allocation4] sm:$0xff]
      %v877 = vld [vmem:[#allocation4 + $0x8] sm:$0xff]
      %v878 = vld [vmem:[#allocation4 + $0x10] sm:$0xff]
      %v879 = vld [vmem:[#allocation4 + $0x18] sm:$0xff]
      %v884 = vlaneseq
      %v885 = vshrl.u32 %v884, 7
      %v886 = vsub.s32 0, %v885
      %v887 = vrot.slane %v531, %v886
      %v888 = vlaneseq
      %v889 = vshrl.u32 %v888, 7
      %v890 = vsub.s32 0, %v889
      %v891 = vrot.slane %v533, %v890
      %v892 = vlaneseq
      %v893 = vshrl.u32 %v892, 7
      %v894 = vsub.s32 0, %v893
      %v895 = vrot.slane %v535, %v894
      %v896 = vlaneseq
      %v897 = vshrl.u32 %v896, 7
      %v898 = vsub.s32 0, %v897
      %v899 = vrot.slane %v537, %v898
      %v904 = vmul.f32 %v887, %v876
      %v905 = vmul.f32 %v891, %v877
      %v906 = vmul.f32 %v895, %v878
      %v907 = vmul.f32 %v899, %v879
      %v908 = vadd.f32 %v904, %v685
      %v909 = vadd.f32 %v905, %v747
      %v910 = vadd.f32 %v906, %v809
      %v911 = vadd.f32 %v907, %v871
      %912 = vst.msk [vmem:[#allocation4] sm:$0xff] %vm305, %v908
      %913 = vst.msk [vmem:[#allocation4 + $0x8] sm:$0xff] %vm305, %v909
      %914 = vst.msk [vmem:[#allocation4 + $0x10] sm:$0xff] %vm305, %v910
      %915 = vst.msk [vmem:[#allocation4 + $0x18] sm:$0xff] %vm305, %v911
      %916 = vst.msk [vmem:[#allocation2] sm:$0x1] %vm614, %v522
      %917 = vst.msk [vmem:[#allocation2 + $0x1] sm:$0x1] %vm614, %v523
      %918 = vst.msk [vmem:[#allocation2 + $0x2] sm:$0x1] %vm614, %v524
      %919 = vst.msk [vmem:[#allocation2 + $0x3] sm:$0x1] %vm614, %v525
      // Predicated region
      $region37: #{multi_head_attention_forward.8} parent=31 // pred_check
        %p920 = pneg %p279
      $region38: #{multi_head_attention_forward.8} parent=31 // pred_check_branch
        %922 = sbr.rel (%p920) target = $region40
      $region39: #{multi_head_attention_forward.8} parent=31 // pred_region
        %v923 = vld [vmem:[#allocation3] sm:$0x1]
        %v924 = vld [vmem:[#allocation3 + $0x1] sm:$0x1]
        %v925 = vld [vmem:[#allocation3 + $0x2] sm:$0x1]
        %v926 = vld [vmem:[#allocation3 + $0x3] sm:$0x1]
        %v927 = vrcp.pop %v923
        %v928 = vrcp.pop %v924
        %v929 = vrcp.pop %v925
        %v930 = vrcp.pop %v926
        %v931 = vld [vmem:[#allocation4] sm:$0xff]
        %v932 = vld [vmem:[#allocation4 + $0x8] sm:$0xff]
        %v933 = vld [vmem:[#allocation4 + $0x10] sm:$0xff]
        %v934 = vld [vmem:[#allocation4 + $0x18] sm:$0xff]
        %v939 = vlaneseq
        %v940 = vshrl.u32 %v939, 7
        %v941 = vsub.s32 0, %v940
        %v942 = vrot.slane %v927, %v941
        %v943 = vlaneseq
        %v944 = vshrl.u32 %v943, 7
        %v945 = vsub.s32 0, %v944
        %v946 = vrot.slane %v928, %v945
        %v947 = vlaneseq
        %v948 = vshrl.u32 %v947, 7
        %v949 = vsub.s32 0, %v948
        %v950 = vrot.slane %v929, %v949
        %v951 = vlaneseq
        %v952 = vshrl.u32 %v951, 7
        %v953 = vsub.s32 0, %v952
        %v954 = vrot.slane %v930, %v953
        %v959 = vmul.f32 %v931, %v942
        %v960 = vmul.f32 %v932, %v946
        %v961 = vmul.f32 %v933, %v950
        %v962 = vmul.f32 %v934, %v954
        %v963 = vpack.c.bf16 %v959, %v959
        %v964 = vpack.c.bf16 %v960, %v960
        %v965 = vpack.c.bf16 %v961, %v961
        %v966 = vpack.c.bf16 %v962, %v962
        %vm967 = vcmask 60416
        %968 = vst.msk [vmem:[%s276] sm:$0xf] %vm967, %v963
        %969 = vst.msk [vmem:[%s276 + $0x4] sm:$0xf] %vm967, %v964
        %970 = vst.msk [vmem:[%s276 + $0x8] sm:$0xf] %vm967, %v965
        %971 = vst.msk [vmem:[%s276 + $0xc] sm:$0xf] %vm967, %v966
      $region40: #{multi_head_attention_forward.8} parent=31 // pred_fallthru
        _
      %s972 = smul.u32 4, %s19
      %p973 = scmp.lt.s32.totalorder %s972, 7
      %s974 = scalar_select %p973, %s972, 7
      %p975 = scmp.lt.s32.totalorder %s20, 0
      %s976 = scalar_select %p975, %s20, 0
      %s977 = sadd.s32 %s976, %s974
      %s978 = smul.addr %s977, 4
      %s979 = scalar_lea.vmem %s3, %s978
      // Predicated region
      $region41: #{multi_head_attention_forward.8} parent=31 // pred_check
        %p980 = pneg %p137
      $region42: #{multi_head_attention_forward.8} parent=31 // pred_check_branch
        %982 = sbr.rel (%p980) target = $region44
      $region43: #{multi_head_attention_forward.8} parent=31 // pred_region
        %s983 = smul.u32 4, %s19
      $region44: #{multi_head_attention_forward.8} parent=31 // pred_fallthru
        _
    $region32: #{multi_head_attention_forward.8} parent=5 // pred_fallthru
      _
    %p984 = scmp.le.s32.totalorder 2, %s9
    // Predicated region
    $region45: #{multi_head_attention_forward.8} parent=5 // pred_check
      %p985 = pneg %p984
    $region46: #{multi_head_attention_forward.8} parent=5 // pred_check_branch
      %987 = sbr.rel (%p985) target = $region48
    $region47: #{multi_head_attention_forward.8} parent=5 // pred_region
      %s988 = ssub.s32 %s9, 2
      // Predicated region
      $region49: #{multi_head_attention_forward.8} parent=47 // pred_check
        %p989 = pneg %p143
      $region50: #{multi_head_attention_forward.8} parent=47 // pred_check_branch
        %991 = sbr.rel (%p989) target = $region52
      $region51: #{multi_head_attention_forward.8} parent=47 // pred_region
        %s992 = smul.u32 4, %s22
        %p993 = scmp.lt.s32.totalorder %s992, 7
        %s994 = scalar_select %p993, %s992, 7
        %p995 = scmp.lt.s32.totalorder %s23, 0
        %s996 = scalar_select %p995, %s23, 0
        %s997 = sadd.s32 %s996, %s994
        %s998 = smul.addr %s997, 4
        %s999 = scalar_lea.vmem %s3, %s998
      $region52: #{multi_head_attention_forward.8} parent=47 // pred_fallthru
        _
    $region48: #{multi_head_attention_forward.8} parent=5 // pred_fallthru
      _
  $region6: #{multi_head_attention_forward.8} parent=0 // loop_footer
    %s13 = sadd.s32 1, %s9
  $region7: #{multi_head_attention_forward.8} parent=0 // loop_footer_branch
    %8 = sbr.rel target = $region3
  $region8: #{multi_head_attention_forward.8} parent=0 // loop_exit
    _

// kernel: multi_head_attention_forward.9
$region0: #{multi_head_attention_forward.9}
  #allocation0 [shape = 'u32[]', space=smem, size = 0x4, offset = 0x4, fixed_abs, tag = 'smem constant byte address 0x4 - core index']
  #allocation1 [shape = 'u32[144,128]{1,0:T(1,128)}', space=vmem, size = 0x12000, scoped, tag = 'internal scratch']
  #allocation2 [shape = 'f32[16,32]{1,0:T(8,128)}', space=vmem, size = 0x2000, scoped, tag = 'scratch operand']
  %s0 = inlined_call_operand.vmem [shape: bf16[16,32], index: 0, kind: input, shape index: {}]
  %s1 = inlined_call_operand.vmem [shape: bf16[32,32], index: 1, kind: input, shape index: {}]
  %s2 = inlined_call_operand.vmem [shape: f32[1,32], index: 2, kind: input, shape index: {}]
  %s3 = inlined_call_operand.vmem [shape: bf16[16,32], index: 3, kind: input, shape index: {}]
  %s4 = inlined_call_operand.vmem [shape: f32[1,32], index: 4, kind: input, shape index: {}]
  %s5 = inlined_call_operand.vmem [shape: f32[1,32], index: 5, kind: input, shape index: {}]
  %s6 = inlined_call_operand.hbm [shape: f32[16,32], index: 6, kind: output, shape index: {}]
  %s7 = sld [smem:[#allocation0]]
  $region42: #{multi_head_attention_forward.9} parent=0
    _
  %s9 = ssub.s32 1, %s7
  %s10 = scalar_select 0, %s9, %s7
  $region1: #{multi_head_attention_forward.9} parent=0
    #allocation3 [shape = 'u8[8192]{0}', space=vmem, size = 0x2000, scoped, tag = 'output window, operand 0, single buffered']
    #allocation4 [shape = 's32[1]{0}', space=sflag, size = 0x4, scoped, tag = 'scoped memory for multi_head_attention_forward.9']
    %11 = vsyncpa [#allocation4], 0
    // Predicated region
    $region2: #{multi_head_attention_forward.9} parent=1 // pred_check
      _
    $region3: #{multi_head_attention_forward.9} parent=1 // pred_check_branch
      %13 = sbr.rel (0) target = $region5
    $region4: #{multi_head_attention_forward.9} parent=1 // pred_region
      _
    $region5: #{multi_head_attention_forward.9} parent=1 // pred_fallthru
      _
    // Predicated region
    $region6: #{multi_head_attention_forward.9} parent=1 // pred_check
      _
    $region7: #{multi_head_attention_forward.9} parent=1 // pred_check_branch
      %15 = sbr.rel (0) target = $region9
    $region8: #{multi_head_attention_forward.9} parent=1 // pred_region
      _
    $region9: #{multi_head_attention_forward.9} parent=1 // pred_fallthru
      _
    // Predicated region
    $region10: #{multi_head_attention_forward.9} parent=1 // pred_check
      _
    $region11: #{multi_head_attention_forward.9} parent=1 // pred_check_branch
      %17 = sbr.rel (0) target = $region13
    $region12: #{multi_head_attention_forward.9} parent=1 // pred_region
      _
    $region13: #{multi_head_attention_forward.9} parent=1 // pred_fallthru
      _
    // Predicated region
    $region14: #{multi_head_attention_forward.9} parent=1 // pred_check
      _
    $region15: #{multi_head_attention_forward.9} parent=1 // pred_check_branch
      %19 = sbr.rel (0) target = $region17
    $region16: #{multi_head_attention_forward.9} parent=1 // pred_region
      _
    $region17: #{multi_head_attention_forward.9} parent=1 // pred_fallthru
      _
    // Predicated region
    $region18: #{multi_head_attention_forward.9} parent=1 // pred_check
      _
    $region19: #{multi_head_attention_forward.9} parent=1 // pred_check_branch
      %21 = sbr.rel (0) target = $region21
    $region20: #{multi_head_attention_forward.9} parent=1 // pred_region
      _
    $region21: #{multi_head_attention_forward.9} parent=1 // pred_fallthru
      _
    // Predicated region
    $region22: #{multi_head_attention_forward.9} parent=1 // pred_check
      _
    $region23: #{multi_head_attention_forward.9} parent=1 // pred_check_branch
      %23 = sbr.rel (0) target = $region25
    $region24: #{multi_head_attention_forward.9} parent=1 // pred_region
      _
    $region25: #{multi_head_attention_forward.9} parent=1 // pred_fallthru
      _
    %p25 = scmp.eq.s32.totalorder 0, 0
    // Predicated region
    $region26: #{multi_head_attention_forward.9} parent=1 // pred_check
      %p26 = pneg %p25
    $region27: #{multi_head_attention_forward.9} parent=1 // pred_check_branch
      %28 = sbr.rel (%p26) target = $region29
    $region28: #{multi_head_attention_forward.9} parent=1 // pred_region
      %vm29 = vcmask 261120
      %30 = vst.msk [vmem:[#allocation2] sm:$0xff] %vm29, 0.0
      %31 = vst.msk [vmem:[#allocation2 + $0x8] sm:$0xff] %vm29, 0.0
    $region29: #{multi_head_attention_forward.9} parent=1 // pred_fallthru
      _
    %v32 = vld [vmem:[#allocation2] sm:$0xff]
    %v33 = vld [vmem:[#allocation2 + $0x8] sm:$0xff]
    %v34 = vld [vmem:[%s0] sm:$0xf]
    %v35 = vld [vmem:[%s0 + $0x4] sm:$0xf]
    %v36 = vld [vmem:[%s1] sm:$0xf]
    %v37 = vld [vmem:[%s1 + $0x4] sm:$0xf]
    %v38 = vld [vmem:[%s1 + $0x8] sm:$0xf]
    %v39 = vld [vmem:[%s1 + $0xc] sm:$0xf]
    %v42 = vunpack.c.l.b16 %v34
    %v43 = vunpack.c.l.b16 %v35
    %v44 = vpack.c.b16 %v43, %v42
    %v49 = vunpack.c.l.b16 %v36
    %v50 = vunpack.c.l.b16 %v37
    %v51 = vunpack.c.l.b16 %v38
    %v52 = vunpack.c.l.b16 %v39
    %v53 = vpack.c.b16 %v50, %v49
    %v54 = vpack.c.b16 %v52, %v51
    %vm57 = vcmask 261120
    %v59 = vsel %vm57, %v44, 0
    %61 = vmatprep.subr.bf16.mxu0 0
    %62 = vmatpush1.bf16.msra.mxu0 %v53
    %63 = vmatprep.subr.bf16.mxu0 0
    %64 = vmatpush1.bf16.msra.mxu0 %v54
    %65 = vmatprep.subr.bf16.mxu0 0
    %66 = vmatpush1.bf16.msra.mxu0 0
    %67 = vmatprep.subr.bf16.mxu0 0
    %68 = vmatpush1.bf16.msra.mxu0 0
    %69 = vmatprep.subr.bf16.mxu0 0
    %70 = vmatpush1.bf16.msra.mxu0 0
    %71 = vmatprep.subr.bf16.mxu0 0
    %72 = vmatpush1.bf16.msra.mxu0 0
    %73 = vmatprep.subr.bf16.mxu0 0
    %74 = vmatpush1.bf16.msra.mxu0 0
    %75 = vmatprep.subr.bf16.mxu0 0
    %76 = vmatpush1.bf16.msra.mxu0 0
    %77 = vmatprep.subr.bf16.mxu0 0
    %78 = vmatpush1.bf16.msra.mxu0 0
    %79 = vmatprep.subr.bf16.mxu0 0
    %80 = vmatpush1.bf16.msra.mxu0 0
    %81 = vmatprep.subr.bf16.mxu0 0
    %82 = vmatpush1.bf16.msra.mxu0 0
    %83 = vmatprep.subr.bf16.mxu0 0
    %84 = vmatpush1.bf16.msra.mxu0 0
    %85 = vmatprep.subr.bf16.mxu0 0
    %86 = vmatpush1.bf16.msra.mxu0 0
    %87 = vmatprep.subr.bf16.mxu0 0
    %88 = vmatpush1.bf16.msra.mxu0 0
    %89 = vmatprep.subr.bf16.mxu0 0
    %90 = vmatpush1.bf16.msra.mxu0 0
    %91 = vmatprep.subr.bf16.mxu0 0
    %92 = vmatpush1.bf16.msra.mxu0 0
    %93 = vmatprep.mubr.bf16.mxu0 0
    %94 = vmatmul.mubr.bf16.gmra.mrb[0].mxu0 %v59
    %v95 = vpop.f32.mrb[0].mxu0
    %v96 = vadd.f32 0.0, %v95
    %v97 = vpop.f32.mrb[0].mxu0
    %v98 = vpop.f32.mrb[0].mxu0
    %v99 = vadd.f32 0.0, %v98
    %v100 = vpop.f32.mrb[0].mxu0
    %101 = vdwg.mxu0
    %v102 = vadd.f32 %v32, %v96
    %v103 = vadd.f32 %v33, %v99
    %104 = vst.msk [vmem:[#allocation2] sm:$0xff] %vm57, %v102
    %105 = vst.msk [vmem:[#allocation2 + $0x8] sm:$0xff] %vm57, %v103
    // Predicated region
    $region30: #{multi_head_attention_forward.9} parent=1 // pred_check
      %p106 = pneg %p25
    $region31: #{multi_head_attention_forward.9} parent=1 // pred_check_branch
      %108 = sbr.rel (%p106) target = $region33
    $region32: #{multi_head_attention_forward.9} parent=1 // pred_region
      %v109 = vld [vmem:[#allocation2] sm:$0xff]
      %v110 = vld [vmem:[#allocation2 + $0x8] sm:$0xff]
      %v111 = vld [vmem:[%s2] sm:$0x1]
      %v113 = vlaneseq
      %v114 = vshrl.u32 %v113, 7
      %v115 = vsub.s32 0, %v114
      %v116 = vrot.slane %v111, %v115
      %v118 = vadd.f32 %v109, %v116
      %v119 = vadd.f32 %v110, %v116
      %v120 = vld [vmem:[%s3] sm:$0xf]
      %v121 = vld [vmem:[%s3 + $0x4] sm:$0xf]
      %v122 = vunpack.c.l.bf16 %v120
      %v123 = vunpack.c.l.bf16 %v121
      %v124 = vadd.f32 %v118, %v122
      %v125 = vadd.f32 %v119, %v123
      %v126 = vsel %vm57, %v124, 0.0
      %127 = vadd.xlane.f32.xlu0 %v126
      %v128 = vpop.xlane.xlu0 %127
      %v129 = vsel %vm57, %v125, 0.0
      %130 = vadd.xlane.f32.xlu0 %v129
      %v131 = vpop.xlane.xlu0 %130
      %v132 = vrcp.pop 32.0
      %v133 = vmul.f32 %v128, %v132
      %v134 = vmul.f32 %v131, %v132
      %v135 = vsub.f32 %v124, %v133
      %v136 = vsub.f32 %v125, %v134
      %v137 = vmul.f32 %v135, %v135
      %v138 = vmul.f32 %v136, %v136
      %v139 = vsel %vm57, %v137, 0.0
      %140 = vadd.xlane.f32.xlu0 %v139
      %v141 = vpop.xlane.xlu0 %140
      %v142 = vsel %vm57, %v138, 0.0
      %143 = vadd.xlane.f32.xlu0 %v142
      %v144 = vpop.xlane.xlu0 %143
      %v145 = vmul.f32 %v141, %v132
      %v146 = vmul.f32 %v144, %v132
      %v147 = vadd.f32 %v145, 1e-05
      %v148 = vadd.f32 %v146, 1e-05
      %v149 = vrsqrt.pop %v147
      %v150 = vrsqrt.pop %v148
      %v151 = vmul.f32 %v135, %v149
      %v152 = vmul.f32 %v136, %v150
      %v153 = vld [vmem:[%s4] sm:$0x1]
      %v155 = vlaneseq
      %v156 = vshrl.u32 %v155, 7
      %v157 = vsub.s32 0, %v156
      %v158 = vrot.slane %v153, %v157
      %v160 = vmul.f32 %v151, %v158
      %v161 = vmul.f32 %v152, %v158
      %v162 = vld [vmem:[%s5] sm:$0x1]
      %v164 = vlaneseq
      %v165 = vshrl.u32 %v164, 7
      %v166 = vsub.s32 0, %v165
      %v167 = vrot.slane %v162, %v166
      %v169 = vadd.f32 %v160, %v167
      %v170 = vadd.f32 %v161, %v167
      %171 = vst.msk [vmem:[#allocation3] sm:$0xff] %vm57, %v169
      %172 = vst.msk [vmem:[#allocation3 + $0x8] sm:$0xff] %vm57, %v170
    $region33: #{multi_head_attention_forward.9} parent=1 // pred_fallthru
      _
    // Predicated region
    $region34: #{multi_head_attention_forward.9} parent=1 // pred_check
      _
    $region35: #{multi_head_attention_forward.9} parent=1 // pred_check_branch
      %174 = sbr.rel (0) target = $region37
    $region36: #{multi_head_attention_forward.9} parent=1 // pred_region
      %s176 = ssub.s32 256, 256
      %177 = vsyncadd [#allocation4], %s176
      %s178 = sshll.u32 [#allocation3], 4
      %s179 = int_to_ptr.vmem [resolvable:$true] %s178
      %184 = dma.vmem_to_hbm [thread:$0]  %s179, 256, %s6, [#allocation4], 128, 128, 8
    $region37: #{multi_head_attention_forward.9} parent=1 // pred_fallthru
      _
    // Predicated region
    $region38: #{multi_head_attention_forward.9} parent=1 // pred_check
      _
    $region39: #{multi_head_attention_forward.9} parent=1 // pred_check_branch
      %186 = sbr.rel (0) target = $region41
    $region40: #{multi_head_attention_forward.9} parent=1 // pred_region
      %187 = dma.done [#allocation4], 256
    $region41: #{multi_head_attention_forward.9} parent=1 // pred_fallthru
      _
    %188 = vsyncpa [#allocation4], 1

</llo_original>
